<compile_context>
chip_gen: v5e
topology: v5e:2x2
jax: 0.10.0
libtpu: 0.0.40
codegen_flags: <defaults>
</compile_context>

<pallas_src>
import jax
import jax.numpy as jnp
import numpy as np
from jax.experimental import pallas as pl
from jax.experimental.pallas import tpu as pltpu


def _pad8(v):
    return -(-v // 8) * 8


def _choose_node_block(n_nodes, *, bf, b, t_in, t_out, h, p_rows,
                       vmem_budget_bytes=8 << 20, target_nb=1024):
    """Pick NB (nodes per grid step, the lane dimension) and the padded node count.

    Node blocks live in the lane dimension, so NB is a multiple of 128.  The
    VMEM estimate covers the double-buffered DMA tiles *and* the live in-kernel
    intermediates (h1/h3/weighted/z), and the 8 MiB default budget fits every
    generation's scoped default (v5e 16 MiB, v6e 32 MiB, v7x 32 of 64 MiB).
    When the padded node count allows it, NB is capped so the grid has at least
    two steps (both v7x TensorCores get work via the "parallel" grid axis);
    on single-TC v5e/v6e this costs only ~0.35 us of extra step overhead.
    """
    UNIT = 128
    n_pad = -(-n_nodes // UNIT) * UNIT

    dma_unit = 4 * UNIT * (t_in * _pad8(bf)          # x tile
                           + p_rows                  # packed parameter slab tile
                           + t_out * _pad8(b))       # output tile
    live_unit = 4 * UNIT * (h * _pad8(bf)            # h1
                            + 2 * t_out * _pad8(bf)  # h3, weighted
                            + t_out * _pad8(b))      # z
    per_unit = 2 * dma_unit + live_unit              # double-buffered IO + live data

    budget_units = max(1, int(vmem_budget_bytes // per_unit))
    nb_units = max(1, min(target_nb // UNIT, budget_units))
    if n_pad >= 2 * UNIT:                            # keep >= 2 grid steps (v7x megacore)
        nb_units = min(nb_units, max(1, n_pad // (2 * UNIT)))
    nb = nb_units * UNIT
    if nb >= n_pad:
        return n_pad, n_pad
    return nb, -(-n_pad // nb) * nb


def local_linear_forward(A, X, params, *, vmem_budget_bytes=8 << 20):
    """X: (B, N, T_in, F) -> (B, N, T_out).  A is deprecated / unused."""
    del A
    W1, b1, W3, b3, W2, b2 = params
    B, N, T_in, F = X.shape
    H = W1.shape[1]                 # 2 * T_in
    T_out = W3.shape[1]
    BF = B * F

    # ---- static layout of the packed per-node parameter slab -----------------
    # Every section is padded to a multiple of 8 rows so every in-kernel slice
    # starts at an 8-aligned sublane offset.
    H_p, T_out_p, BF_p = _pad8(H), _pad8(T_out), _pad8(BF)
    OFF_W1 = 0                       # rows i*H_p + h        : W1[n, h, i]
    OFF_B1 = OFF_W1 + T_in * H_p     # rows h                : b1[n, h]
    OFF_W3 = OFF_B1 + H_p            # rows h*T_out_p + t    : W3[n, t, h]
    OFF_B3 = OFF_W3 + H * T_out_p    # rows t                : b3[n, t]
    OFF_W2 = OFF_B3 + T_out_p        # rows f*B + b          : W2[n, f]
    OFF_B2 = OFF_W2 + BF_p           # row 0                 : b2[n]
    P_ROWS = OFF_B2 + 8

    NB, Npad = _choose_node_block(N, bf=BF, b=B, t_in=T_in, t_out=T_out, h=H,
                                  p_rows=P_ROWS,
                                  vmem_budget_bytes=vmem_budget_bytes)

    # ---- layout plumbing (plain JAX): node axis LAST (lane dim) everywhere ----
    # x_nl[i, f*B + b, n] = X[b, n, i, f]   (rows are f-major, b-minor)
    x_nl = jnp.transpose(X, (2, 3, 0, 1)).reshape(T_in, BF, N)

    def pad_rows(a2d, rows):
        return jnp.pad(a2d, ((0, rows - a2d.shape[0]), (0, 0)))

    w1_sec = jnp.transpose(W1, (2, 1, 0))                      # (T_in, H, N)
    w1_sec = jnp.pad(w1_sec, ((0, 0), (0, H_p - H), (0, 0))).reshape(T_in * H_p, N)
    b1_sec = pad_rows(b1.T, H_p)                               # (H_p, N)
    w3_sec = jnp.transpose(W3, (2, 1, 0))                      # (H, T_out, N)
    w3_sec = jnp.pad(w3_sec, ((0, 0), (0, T_out_p - T_out), (0, 0))).reshape(H * T_out_p, N)
    b3_sec = pad_rows(b3.T, T_out_p)                           # (T_out_p, N)
    w2_sec = pad_rows(jnp.repeat(W2.T, B, axis=0), BF_p)       # row f*B+b = W2[n, f]
    b2_sec = pad_rows(b2.reshape(1, N), 8)
    slab = jnp.concatenate([w1_sec, b1_sec, w3_sec, b3_sec, w2_sec, b2_sec], axis=0)
    assert slab.shape[0] == P_ROWS

    def pad_nodes(a):
        if Npad == N:
            return a
        return jnp.pad(a, [(0, 0)] * (a.ndim - 1) + [(0, Npad - N)])

    x_nl, slab = pad_nodes(x_nl), pad_nodes(slab)

    # ---- kernel: NB nodes per grid step, all compute lane-wide on the VPU -----
    def kernel(x_ref, p_ref, o_ref):
        nb = x_ref.shape[-1]
        # (1) h1[h, r, n] = ReLU(sum_i x[i, r, n] * W1[n, h, i] + b1[n, h])
        h1 = jnp.zeros((H, BF, nb), jnp.float32)
        for i in range(T_in):                                    # tiny static unroll
            x_i = x_ref[i]                                       # (BF, nb)
            w1_i = p_ref[OFF_W1 + i * H_p:OFF_W1 + i * H_p + H, :]   # (H, nb)
            h1 = h1 + w1_i[:, None, :] * x_i[None, :, :]
        b1_t = p_ref[OFF_B1:OFF_B1 + H, :]
        h1 = jnp.maximum(h1 + b1_t[:, None, :], 0.0)

        # (2) h3[t, r, n] = sum_h h1[h, r, n] * W3[n, t, h] + b3[n, t]
        h3 = jnp.zeros((T_out, BF, nb), jnp.float32)
        for hh in range(H):
            w3_h = p_ref[OFF_W3 + hh * T_out_p:OFF_W3 + hh * T_out_p + T_out, :]
            h3 = h3 + w3_h[:, None, :] * h1[hh][None, :, :]
        b3_t = p_ref[OFF_B3:OFF_B3 + T_out, :]
        h3 = h3 + b3_t[:, None, :]

        # (3) z[t, b, n] = ReLU(sum_f h3[t, f*B + b, n] * W2[n, f] + b2[n])
        #     Rows are f-major, so the F-reduce is F contiguous sublane-slice adds
        #     (exactly the nonzero work; no masked (B, B*F) contraction).
        w2_rows = p_ref[OFF_W2:OFF_W2 + BF, :]                   # (BF, nb)
        weighted = h3 * w2_rows[None, :, :]
        z = weighted[:, 0:B, :]
        for f_idx in range(1, F):
            z = z + weighted[:, f_idx * B:(f_idx + 1) * B, :]
        b2_t = p_ref[OFF_B2:OFF_B2 + 1, :]
        z = jnp.maximum(z + b2_t[None, :, :], 0.0)

        # (4) one dense, lane-wide store of the whole (T_out, B, NB) tile.
        o_ref[...] = z.astype(o_ref.dtype)

    out_tbn = pl.pallas_call(
        kernel,
        out_shape=jax.ShapeDtypeStruct((T_out, B, Npad), X.dtype),
        grid=(Npad // NB,),
        in_specs=[
            pl.BlockSpec((T_in, BF, NB), lambda g: (0, 0, g)),
            pl.BlockSpec((P_ROWS, NB), lambda g: (0, g)),
            # TODO(synk): add pipeline_mode=pl.Buffered(3) on the x spec if an
            # xprof trace still shows exposed copy-in at large N.
        ],
        out_specs=pl.BlockSpec((T_out, B, NB), lambda g: (0, 0, g)),
        compiler_params=pltpu.CompilerParams(
            dimension_semantics=("parallel",),
            vmem_limit_bytes=32 * 1024 * 1024,
        ),
    )(x_nl, slab)

    out = jnp.transpose(out_tbn, (1, 2, 0))      # (B, Npad, T_out): tiny XLA transpose
    if Npad != N:
        out = out[:, :N, :]
    return out


def init_params(key, N, F, T_in, T_out, dtype=jnp.float32):
    """Deterministic nn.Linear-style init (U(-1/sqrt(fan_in), 1/sqrt(fan_in)))."""
    H = 2 * T_in
    ks = jax.random.split(key, 6)

    def u(k, shape, fan_in):
        bound = 1.0 / (fan_in ** 0.5)
        return jax.random.uniform(k, shape, dtype, -bound, bound)

    W1 = u(ks[0], (N, H, T_in), T_in)      # linears1[n].weight
    b1 = u(ks[1], (N, H), T_in)            # linears1[n].bias
    W3 = u(ks[2], (N, T_out, H), H)        # linears3[n].weight
    b3 = u(ks[3], (N, T_out), H)           # linears3[n].bias
    W2 = u(ks[4], (N, F), F)               # linears2[n].weight (the single (1, F) row)
    b2 = u(ks[5], (N,), F)                 # linears2[n].bias
    return W1, b1, W3, b3, W2, b2


def reference_forward(X, params):
    """Pure-JAX reproduction of the PyTorch per-node loop (vectorized over nodes)."""
    W1, b1, W3, b3, W2, b2 = params
    B, N, T_in, F = X.shape
    T_out = W3.shape[1]
    seq = jnp.transpose(X, (1, 0, 3, 2)).reshape(N, B * F, T_in)      # row = b*F + f
    h = jnp.maximum(jnp.einsum("nri,nhi->nrh", seq, W1) + b1[:, None, :], 0.0)
    h = jnp.einsum("nrh,nth->nrt", h, W3) + b3[:, None, :]            # (N, B*F, T_out)
    h = h.reshape(N, B, F, T_out)
    z = jnp.einsum("nbft,nf->nbt", h, W2) + b2[:, None, None]
    z = jnp.maximum(z, 0.0)                                           # (N, B, T_out)
    return jnp.transpose(z, (1, 0, 2))                                # (B, N, T_out)


if __name__ == "__main__":
    # Small shapes consistent with the module.  N=192 exercises node padding
    # (-> 256 lanes) and a 2-step "parallel" grid.
    B, N, T_in, T_out, F = 2, 192, 8, 4, 4

    key = jax.random.PRNGKey(0)
    kx, kp = jax.random.split(key)
    X = jax.random.normal(kx, (B, N, T_in, F), dtype=jnp.float32)
    A = jnp.eye(N, dtype=jnp.float32)      # deprecated / unused by the forward
    params = init_params(kp, N, F, T_in, T_out)

    out = jax.jit(local_linear_forward)(A, X, params)
    out = jax.block_until_ready(out)

    ref = reference_forward(X, params)
    np.testing.assert_allclose(np.asarray(out), np.asarray(ref), rtol=1e-5, atol=1e-5)
    assert out.shape == (B, N, T_out)

    print("KERNEL_OK")
</pallas_src>

<mosaic_0001>
module attributes {stable_mosaic.version = 11 : i64} {
  func.func @kernel(%arg0: i32, %arg1: memref<8x8x128xf32, #tpu.memory_space<vmem>>, %arg2: memref<296x128xf32, #tpu.memory_space<vmem>>, %arg3: memref<4x2x128xf32, #tpu.memory_space<vmem>>) attributes {dimension_semantics = [#tpu.dimension_semantics<parallel>], iteration_bounds = array<i64: 2>, scalar_prefetch = 0 : i64, scratch_operands = 0 : i64, tpu.core_type = #tpu.core_type<tc>, window_params = [{transform_indices = @transform_0, window_bounds = array<i64: 8, 8, 128>}, {transform_indices = @transform_1, window_bounds = array<i64: 296, 128>}, {transform_indices = @transform_2, window_bounds = array<i64: 4, 2, 128>}]} {
    %cst = arith.constant 0.000000e+00 : f32
    %0 = vector.broadcast %cst : f32 to vector<16x8x128xf32>
    %c0 = arith.constant 0 : index
    %c0_0 = arith.constant 0 : index
    %c0_1 = arith.constant 0 : index
    %1 = vector.load %arg1[%c0, %c0_0, %c0_1] : memref<8x8x128xf32, #tpu.memory_space<vmem>>, vector<1x8x128xf32>
    %2 = vector.shape_cast %1 : vector<1x8x128xf32> to vector<8x128xf32>
    %c0_2 = arith.constant 0 : index
    %c0_3 = arith.constant 0 : index
    %3 = vector.load %arg2[%c0_2, %c0_3] : memref<296x128xf32, #tpu.memory_space<vmem>>, vector<16x128xf32>
    %4 = vector.shape_cast %3 : vector<16x128xf32> to vector<16x1x128xf32>
    %5 = vector.shape_cast %2 : vector<8x128xf32> to vector<1x8x128xf32>
    %6 = vector.broadcast %4 : vector<16x1x128xf32> to vector<16x8x128xf32>
    %7 = vector.broadcast %5 : vector<1x8x128xf32> to vector<16x8x128xf32>
    %8 = arith.mulf %6, %7 : vector<16x8x128xf32>
    %9 = arith.addf %0, %8 : vector<16x8x128xf32>
    %c1 = arith.constant 1 : index
    %c0_4 = arith.constant 0 : index
    %c0_5 = arith.constant 0 : index
    %10 = vector.load %arg1[%c1, %c0_4, %c0_5] : memref<8x8x128xf32, #tpu.memory_space<vmem>>, vector<1x8x128xf32>
    %11 = vector.shape_cast %10 : vector<1x8x128xf32> to vector<8x128xf32>
    %c16 = arith.constant 16 : index
    %c0_6 = arith.constant 0 : index
    %12 = vector.load %arg2[%c16, %c0_6] : memref<296x128xf32, #tpu.memory_space<vmem>>, vector<16x128xf32>
    %13 = vector.shape_cast %12 : vector<16x128xf32> to vector<16x1x128xf32>
    %14 = vector.shape_cast %11 : vector<8x128xf32> to vector<1x8x128xf32>
    %15 = vector.broadcast %13 : vector<16x1x128xf32> to vector<16x8x128xf32>
    %16 = vector.broadcast %14 : vector<1x8x128xf32> to vector<16x8x128xf32>
    %17 = arith.mulf %15, %16 : vector<16x8x128xf32>
    %18 = arith.addf %9, %17 : vector<16x8x128xf32>
    %c2 = arith.constant 2 : index
    %c0_7 = arith.constant 0 : index
    %c0_8 = arith.constant 0 : index
    %19 = vector.load %arg1[%c2, %c0_7, %c0_8] : memref<8x8x128xf32, #tpu.memory_space<vmem>>, vector<1x8x128xf32>
    %20 = vector.shape_cast %19 : vector<1x8x128xf32> to vector<8x128xf32>
    %c32 = arith.constant 32 : index
    %c0_9 = arith.constant 0 : index
    %21 = vector.load %arg2[%c32, %c0_9] : memref<296x128xf32, #tpu.memory_space<vmem>>, vector<16x128xf32>
    %22 = vector.shape_cast %21 : vector<16x128xf32> to vector<16x1x128xf32>
    %23 = vector.shape_cast %20 : vector<8x128xf32> to vector<1x8x128xf32>
    %24 = vector.broadcast %22 : vector<16x1x128xf32> to vector<16x8x128xf32>
    %25 = vector.broadcast %23 : vector<1x8x128xf32> to vector<16x8x128xf32>
    %26 = arith.mulf %24, %25 : vector<16x8x128xf32>
    %27 = arith.addf %18, %26 : vector<16x8x128xf32>
    %c3 = arith.constant 3 : index
    %c0_10 = arith.constant 0 : index
    %c0_11 = arith.constant 0 : index
    %28 = vector.load %arg1[%c3, %c0_10, %c0_11] : memref<8x8x128xf32, #tpu.memory_space<vmem>>, vector<1x8x128xf32>
    %29 = vector.shape_cast %28 : vector<1x8x128xf32> to vector<8x128xf32>
    %c48 = arith.constant 48 : index
    %c0_12 = arith.constant 0 : index
    %30 = vector.load %arg2[%c48, %c0_12] : memref<296x128xf32, #tpu.memory_space<vmem>>, vector<16x128xf32>
    %31 = vector.shape_cast %30 : vector<16x128xf32> to vector<16x1x128xf32>
    %32 = vector.shape_cast %29 : vector<8x128xf32> to vector<1x8x128xf32>
    %33 = vector.broadcast %31 : vector<16x1x128xf32> to vector<16x8x128xf32>
    %34 = vector.broadcast %32 : vector<1x8x128xf32> to vector<16x8x128xf32>
    %35 = arith.mulf %33, %34 : vector<16x8x128xf32>
    %36 = arith.addf %27, %35 : vector<16x8x128xf32>
    %c4 = arith.constant 4 : index
    %c0_13 = arith.constant 0 : index
    %c0_14 = arith.constant 0 : index
    %37 = vector.load %arg1[%c4, %c0_13, %c0_14] : memref<8x8x128xf32, #tpu.memory_space<vmem>>, vector<1x8x128xf32>
    %38 = vector.shape_cast %37 : vector<1x8x128xf32> to vector<8x128xf32>
    %c64 = arith.constant 64 : index
    %c0_15 = arith.constant 0 : index
    %39 = vector.load %arg2[%c64, %c0_15] : memref<296x128xf32, #tpu.memory_space<vmem>>, vector<16x128xf32>
    %40 = vector.shape_cast %39 : vector<16x128xf32> to vector<16x1x128xf32>
    %41 = vector.shape_cast %38 : vector<8x128xf32> to vector<1x8x128xf32>
    %42 = vector.broadcast %40 : vector<16x1x128xf32> to vector<16x8x128xf32>
    %43 = vector.broadcast %41 : vector<1x8x128xf32> to vector<16x8x128xf32>
    %44 = arith.mulf %42, %43 : vector<16x8x128xf32>
    %45 = arith.addf %36, %44 : vector<16x8x128xf32>
    %c5 = arith.constant 5 : index
    %c0_16 = arith.constant 0 : index
    %c0_17 = arith.constant 0 : index
    %46 = vector.load %arg1[%c5, %c0_16, %c0_17] : memref<8x8x128xf32, #tpu.memory_space<vmem>>, vector<1x8x128xf32>
    %47 = vector.shape_cast %46 : vector<1x8x128xf32> to vector<8x128xf32>
    %c80 = arith.constant 80 : index
    %c0_18 = arith.constant 0 : index
    %48 = vector.load %arg2[%c80, %c0_18] : memref<296x128xf32, #tpu.memory_space<vmem>>, vector<16x128xf32>
    %49 = vector.shape_cast %48 : vector<16x128xf32> to vector<16x1x128xf32>
    %50 = vector.shape_cast %47 : vector<8x128xf32> to vector<1x8x128xf32>
    %51 = vector.broadcast %49 : vector<16x1x128xf32> to vector<16x8x128xf32>
    %52 = vector.broadcast %50 : vector<1x8x128xf32> to vector<16x8x128xf32>
    %53 = arith.mulf %51, %52 : vector<16x8x128xf32>
    %54 = arith.addf %45, %53 : vector<16x8x128xf32>
    %c6 = arith.constant 6 : index
    %c0_19 = arith.constant 0 : index
    %c0_20 = arith.constant 0 : index
    %55 = vector.load %arg1[%c6, %c0_19, %c0_20] : memref<8x8x128xf32, #tpu.memory_space<vmem>>, vector<1x8x128xf32>
    %56 = vector.shape_cast %55 : vector<1x8x128xf32> to vector<8x128xf32>
    %c96 = arith.constant 96 : index
    %c0_21 = arith.constant 0 : index
    %57 = vector.load %arg2[%c96, %c0_21] : memref<296x128xf32, #tpu.memory_space<vmem>>, vector<16x128xf32>
    %58 = vector.shape_cast %57 : vector<16x128xf32> to vector<16x1x128xf32>
    %59 = vector.shape_cast %56 : vector<8x128xf32> to vector<1x8x128xf32>
    %60 = vector.broadcast %58 : vector<16x1x128xf32> to vector<16x8x128xf32>
    %61 = vector.broadcast %59 : vector<1x8x128xf32> to vector<16x8x128xf32>
    %62 = arith.mulf %60, %61 : vector<16x8x128xf32>
    %63 = arith.addf %54, %62 : vector<16x8x128xf32>
    %c7 = arith.constant 7 : index
    %c0_22 = arith.constant 0 : index
    %c0_23 = arith.constant 0 : index
    %64 = vector.load %arg1[%c7, %c0_22, %c0_23] : memref<8x8x128xf32, #tpu.memory_space<vmem>>, vector<1x8x128xf32>
    %65 = vector.shape_cast %64 : vector<1x8x128xf32> to vector<8x128xf32>
    %c112 = arith.constant 112 : index
    %c0_24 = arith.constant 0 : index
    %66 = vector.load %arg2[%c112, %c0_24] : memref<296x128xf32, #tpu.memory_space<vmem>>, vector<16x128xf32>
    %67 = vector.shape_cast %66 : vector<16x128xf32> to vector<16x1x128xf32>
    %68 = vector.shape_cast %65 : vector<8x128xf32> to vector<1x8x128xf32>
    %69 = vector.broadcast %67 : vector<16x1x128xf32> to vector<16x8x128xf32>
    %70 = vector.broadcast %68 : vector<1x8x128xf32> to vector<16x8x128xf32>
    %71 = arith.mulf %69, %70 : vector<16x8x128xf32>
    %72 = arith.addf %63, %71 : vector<16x8x128xf32>
    %c128 = arith.constant 128 : index
    %c0_25 = arith.constant 0 : index
    %73 = vector.load %arg2[%c128, %c0_25] : memref<296x128xf32, #tpu.memory_space<vmem>>, vector<16x128xf32>
    %74 = vector.shape_cast %73 : vector<16x128xf32> to vector<16x1x128xf32>
    %75 = vector.broadcast %74 : vector<16x1x128xf32> to vector<16x8x128xf32>
    %76 = arith.addf %72, %75 : vector<16x8x128xf32>
    %cst_26 = arith.constant 0.000000e+00 : f32
    %77 = vector.broadcast %cst_26 : f32 to vector<16x8x128xf32>
    %78 = arith.maximumf %76, %77 : vector<16x8x128xf32>
    %cst_27 = arith.constant 0.000000e+00 : f32
    %79 = vector.broadcast %cst_27 : f32 to vector<4x8x128xf32>
    %c144 = arith.constant 144 : index
    %c0_28 = arith.constant 0 : index
    %80 = vector.load %arg2[%c144, %c0_28] : memref<296x128xf32, #tpu.memory_space<vmem>>, vector<4x128xf32>
    %81 = vector.shape_cast %80 : vector<4x128xf32> to vector<4x1x128xf32>
    %82 = vector.extract_strided_slice %78 {offsets = [0, 0, 0], sizes = [1, 8, 128], strides = [1, 1, 1]} : vector<16x8x128xf32> to vector<1x8x128xf32>
    %83 = vector.shape_cast %82 : vector<1x8x128xf32> to vector<8x128xf32>
    %84 = vector.shape_cast %83 : vector<8x128xf32> to vector<1x8x128xf32>
    %85 = vector.broadcast %81 : vector<4x1x128xf32> to vector<4x8x128xf32>
    %86 = vector.broadcast %84 : vector<1x8x128xf32> to vector<4x8x128xf32>
    %87 = arith.mulf %85, %86 : vector<4x8x128xf32>
    %88 = arith.addf %79, %87 : vector<4x8x128xf32>
    %c152 = arith.constant 152 : index
    %c0_29 = arith.constant 0 : index
    %89 = vector.load %arg2[%c152, %c0_29] : memref<296x128xf32, #tpu.memory_space<vmem>>, vector<4x128xf32>
    %90 = vector.shape_cast %89 : vector<4x128xf32> to vector<4x1x128xf32>
    %91 = vector.extract_strided_slice %78 {offsets = [1, 0, 0], sizes = [1, 8, 128], strides = [1, 1, 1]} : vector<16x8x128xf32> to vector<1x8x128xf32>
    %92 = vector.shape_cast %91 : vector<1x8x128xf32> to vector<8x128xf32>
    %93 = vector.shape_cast %92 : vector<8x128xf32> to vector<1x8x128xf32>
    %94 = vector.broadcast %90 : vector<4x1x128xf32> to vector<4x8x128xf32>
    %95 = vector.broadcast %93 : vector<1x8x128xf32> to vector<4x8x128xf32>
    %96 = arith.mulf %94, %95 : vector<4x8x128xf32>
    %97 = arith.addf %88, %96 : vector<4x8x128xf32>
    %c160 = arith.constant 160 : index
    %c0_30 = arith.constant 0 : index
    %98 = vector.load %arg2[%c160, %c0_30] : memref<296x128xf32, #tpu.memory_space<vmem>>, vector<4x128xf32>
    %99 = vector.shape_cast %98 : vector<4x128xf32> to vector<4x1x128xf32>
    %100 = vector.extract_strided_slice %78 {offsets = [2, 0, 0], sizes = [1, 8, 128], strides = [1, 1, 1]} : vector<16x8x128xf32> to vector<1x8x128xf32>
    %101 = vector.shape_cast %100 : vector<1x8x128xf32> to vector<8x128xf32>
    %102 = vector.shape_cast %101 : vector<8x128xf32> to vector<1x8x128xf32>
    %103 = vector.broadcast %99 : vector<4x1x128xf32> to vector<4x8x128xf32>
    %104 = vector.broadcast %102 : vector<1x8x128xf32> to vector<4x8x128xf32>
    %105 = arith.mulf %103, %104 : vector<4x8x128xf32>
    %106 = arith.addf %97, %105 : vector<4x8x128xf32>
    %c168 = arith.constant 168 : index
    %c0_31 = arith.constant 0 : index
    %107 = vector.load %arg2[%c168, %c0_31] : memref<296x128xf32, #tpu.memory_space<vmem>>, vector<4x128xf32>
    %108 = vector.shape_cast %107 : vector<4x128xf32> to vector<4x1x128xf32>
    %109 = vector.extract_strided_slice %78 {offsets = [3, 0, 0], sizes = [1, 8, 128], strides = [1, 1, 1]} : vector<16x8x128xf32> to vector<1x8x128xf32>
    %110 = vector.shape_cast %109 : vector<1x8x128xf32> to vector<8x128xf32>
    %111 = vector.shape_cast %110 : vector<8x128xf32> to vector<1x8x128xf32>
    %112 = vector.broadcast %108 : vector<4x1x128xf32> to vector<4x8x128xf32>
    %113 = vector.broadcast %111 : vector<1x8x128xf32> to vector<4x8x128xf32>
    %114 = arith.mulf %112, %113 : vector<4x8x128xf32>
    %115 = arith.addf %106, %114 : vector<4x8x128xf32>
    %c176 = arith.constant 176 : index
    %c0_32 = arith.constant 0 : index
    %116 = vector.load %arg2[%c176, %c0_32] : memref<296x128xf32, #tpu.memory_space<vmem>>, vector<4x128xf32>
    %117 = vector.shape_cast %116 : vector<4x128xf32> to vector<4x1x128xf32>
    %118 = vector.extract_strided_slice %78 {offsets = [4, 0, 0], sizes = [1, 8, 128], strides = [1, 1, 1]} : vector<16x8x128xf32> to vector<1x8x128xf32>
    %119 = vector.shape_cast %118 : vector<1x8x128xf32> to vector<8x128xf32>
    %120 = vector.shape_cast %119 : vector<8x128xf32> to vector<1x8x128xf32>
    %121 = vector.broadcast %117 : vector<4x1x128xf32> to vector<4x8x128xf32>
    %122 = vector.broadcast %120 : vector<1x8x128xf32> to vector<4x8x128xf32>
    %123 = arith.mulf %121, %122 : vector<4x8x128xf32>
    %124 = arith.addf %115, %123 : vector<4x8x128xf32>
    %c184 = arith.constant 184 : index
    %c0_33 = arith.constant 0 : index
    %125 = vector.load %arg2[%c184, %c0_33] : memref<296x128xf32, #tpu.memory_space<vmem>>, vector<4x128xf32>
    %126 = vector.shape_cast %125 : vector<4x128xf32> to vector<4x1x128xf32>
    %127 = vector.extract_strided_slice %78 {offsets = [5, 0, 0], sizes = [1, 8, 128], strides = [1, 1, 1]} : vector<16x8x128xf32> to vector<1x8x128xf32>
    %128 = vector.shape_cast %127 : vector<1x8x128xf32> to vector<8x128xf32>
    %129 = vector.shape_cast %128 : vector<8x128xf32> to vector<1x8x128xf32>
    %130 = vector.broadcast %126 : vector<4x1x128xf32> to vector<4x8x128xf32>
    %131 = vector.broadcast %129 : vector<1x8x128xf32> to vector<4x8x128xf32>
    %132 = arith.mulf %130, %131 : vector<4x8x128xf32>
    %133 = arith.addf %124, %132 : vector<4x8x128xf32>
    %c192 = arith.constant 192 : index
    %c0_34 = arith.constant 0 : index
    %134 = vector.load %arg2[%c192, %c0_34] : memref<296x128xf32, #tpu.memory_space<vmem>>, vector<4x128xf32>
    %135 = vector.shape_cast %134 : vector<4x128xf32> to vector<4x1x128xf32>
    %136 = vector.extract_strided_slice %78 {offsets = [6, 0, 0], sizes = [1, 8, 128], strides = [1, 1, 1]} : vector<16x8x128xf32> to vector<1x8x128xf32>
    %137 = vector.shape_cast %136 : vector<1x8x128xf32> to vector<8x128xf32>
    %138 = vector.shape_cast %137 : vector<8x128xf32> to vector<1x8x128xf32>
    %139 = vector.broadcast %135 : vector<4x1x128xf32> to vector<4x8x128xf32>
    %140 = vector.broadcast %138 : vector<1x8x128xf32> to vector<4x8x128xf32>
    %141 = arith.mulf %139, %140 : vector<4x8x128xf32>
    %142 = arith.addf %133, %141 : vector<4x8x128xf32>
    %c200 = arith.constant 200 : index
    %c0_35 = arith.constant 0 : index
    %143 = vector.load %arg2[%c200, %c0_35] : memref<296x128xf32, #tpu.memory_space<vmem>>, vector<4x128xf32>
    %144 = vector.shape_cast %143 : vector<4x128xf32> to vector<4x1x128xf32>
    %145 = vector.extract_strided_slice %78 {offsets = [7, 0, 0], sizes = [1, 8, 128], strides = [1, 1, 1]} : vector<16x8x128xf32> to vector<1x8x128xf32>
    %146 = vector.shape_cast %145 : vector<1x8x128xf32> to vector<8x128xf32>
    %147 = vector.shape_cast %146 : vector<8x128xf32> to vector<1x8x128xf32>
    %148 = vector.broadcast %144 : vector<4x1x128xf32> to vector<4x8x128xf32>
    %149 = vector.broadcast %147 : vector<1x8x128xf32> to vector<4x8x128xf32>
    %150 = arith.mulf %148, %149 : vector<4x8x128xf32>
    %151 = arith.addf %142, %150 : vector<4x8x128xf32>
    %c208 = arith.constant 208 : index
    %c0_36 = arith.constant 0 : index
    %152 = vector.load %arg2[%c208, %c0_36] : memref<296x128xf32, #tpu.memory_space<vmem>>, vector<4x128xf32>
    %153 = vector.shape_cast %152 : vector<4x128xf32> to vector<4x1x128xf32>
    %154 = vector.extract_strided_slice %78 {offsets = [8, 0, 0], sizes = [1, 8, 128], strides = [1, 1, 1]} : vector<16x8x128xf32> to vector<1x8x128xf32>
    %155 = vector.shape_cast %154 : vector<1x8x128xf32> to vector<8x128xf32>
    %156 = vector.shape_cast %155 : vector<8x128xf32> to vector<1x8x128xf32>
    %157 = vector.broadcast %153 : vector<4x1x128xf32> to vector<4x8x128xf32>
    %158 = vector.broadcast %156 : vector<1x8x128xf32> to vector<4x8x128xf32>
    %159 = arith.mulf %157, %158 : vector<4x8x128xf32>
    %160 = arith.addf %151, %159 : vector<4x8x128xf32>
    %c216 = arith.constant 216 : index
    %c0_37 = arith.constant 0 : index
    %161 = vector.load %arg2[%c216, %c0_37] : memref<296x128xf32, #tpu.memory_space<vmem>>, vector<4x128xf32>
    %162 = vector.shape_cast %161 : vector<4x128xf32> to vector<4x1x128xf32>
    %163 = vector.extract_strided_slice %78 {offsets = [9, 0, 0], sizes = [1, 8, 128], strides = [1, 1, 1]} : vector<16x8x128xf32> to vector<1x8x128xf32>
    %164 = vector.shape_cast %163 : vector<1x8x128xf32> to vector<8x128xf32>
    %165 = vector.shape_cast %164 : vector<8x128xf32> to vector<1x8x128xf32>
    %166 = vector.broadcast %162 : vector<4x1x128xf32> to vector<4x8x128xf32>
    %167 = vector.broadcast %165 : vector<1x8x128xf32> to vector<4x8x128xf32>
    %168 = arith.mulf %166, %167 : vector<4x8x128xf32>
    %169 = arith.addf %160, %168 : vector<4x8x128xf32>
    %c224 = arith.constant 224 : index
    %c0_38 = arith.constant 0 : index
    %170 = vector.load %arg2[%c224, %c0_38] : memref<296x128xf32, #tpu.memory_space<vmem>>, vector<4x128xf32>
    %171 = vector.shape_cast %170 : vector<4x128xf32> to vector<4x1x128xf32>
    %172 = vector.extract_strided_slice %78 {offsets = [10, 0, 0], sizes = [1, 8, 128], strides = [1, 1, 1]} : vector<16x8x128xf32> to vector<1x8x128xf32>
    %173 = vector.shape_cast %172 : vector<1x8x128xf32> to vector<8x128xf32>
    %174 = vector.shape_cast %173 : vector<8x128xf32> to vector<1x8x128xf32>
    %175 = vector.broadcast %171 : vector<4x1x128xf32> to vector<4x8x128xf32>
    %176 = vector.broadcast %174 : vector<1x8x128xf32> to vector<4x8x128xf32>
    %177 = arith.mulf %175, %176 : vector<4x8x128xf32>
    %178 = arith.addf %169, %177 : vector<4x8x128xf32>
    %c232 = arith.constant 232 : index
    %c0_39 = arith.constant 0 : index
    %179 = vector.load %arg2[%c232, %c0_39] : memref<296x128xf32, #tpu.memory_space<vmem>>, vector<4x128xf32>
    %180 = vector.shape_cast %179 : vector<4x128xf32> to vector<4x1x128xf32>
    %181 = vector.extract_strided_slice %78 {offsets = [11, 0, 0], sizes = [1, 8, 128], strides = [1, 1, 1]} : vector<16x8x128xf32> to vector<1x8x128xf32>
    %182 = vector.shape_cast %181 : vector<1x8x128xf32> to vector<8x128xf32>
    %183 = vector.shape_cast %182 : vector<8x128xf32> to vector<1x8x128xf32>
    %184 = vector.broadcast %180 : vector<4x1x128xf32> to vector<4x8x128xf32>
    %185 = vector.broadcast %183 : vector<1x8x128xf32> to vector<4x8x128xf32>
    %186 = arith.mulf %184, %185 : vector<4x8x128xf32>
    %187 = arith.addf %178, %186 : vector<4x8x128xf32>
    %c240 = arith.constant 240 : index
    %c0_40 = arith.constant 0 : index
    %188 = vector.load %arg2[%c240, %c0_40] : memref<296x128xf32, #tpu.memory_space<vmem>>, vector<4x128xf32>
    %189 = vector.shape_cast %188 : vector<4x128xf32> to vector<4x1x128xf32>
    %190 = vector.extract_strided_slice %78 {offsets = [12, 0, 0], sizes = [1, 8, 128], strides = [1, 1, 1]} : vector<16x8x128xf32> to vector<1x8x128xf32>
    %191 = vector.shape_cast %190 : vector<1x8x128xf32> to vector<8x128xf32>
    %192 = vector.shape_cast %191 : vector<8x128xf32> to vector<1x8x128xf32>
    %193 = vector.broadcast %189 : vector<4x1x128xf32> to vector<4x8x128xf32>
    %194 = vector.broadcast %192 : vector<1x8x128xf32> to vector<4x8x128xf32>
    %195 = arith.mulf %193, %194 : vector<4x8x128xf32>
    %196 = arith.addf %187, %195 : vector<4x8x128xf32>
    %c248 = arith.constant 248 : index
    %c0_41 = arith.constant 0 : index
    %197 = vector.load %arg2[%c248, %c0_41] : memref<296x128xf32, #tpu.memory_space<vmem>>, vector<4x128xf32>
    %198 = vector.shape_cast %197 : vector<4x128xf32> to vector<4x1x128xf32>
    %199 = vector.extract_strided_slice %78 {offsets = [13, 0, 0], sizes = [1, 8, 128], strides = [1, 1, 1]} : vector<16x8x128xf32> to vector<1x8x128xf32>
    %200 = vector.shape_cast %199 : vector<1x8x128xf32> to vector<8x128xf32>
    %201 = vector.shape_cast %200 : vector<8x128xf32> to vector<1x8x128xf32>
    %202 = vector.broadcast %198 : vector<4x1x128xf32> to vector<4x8x128xf32>
    %203 = vector.broadcast %201 : vector<1x8x128xf32> to vector<4x8x128xf32>
    %204 = arith.mulf %202, %203 : vector<4x8x128xf32>
    %205 = arith.addf %196, %204 : vector<4x8x128xf32>
    %c256 = arith.constant 256 : index
    %c0_42 = arith.constant 0 : index
    %206 = vector.load %arg2[%c256, %c0_42] : memref<296x128xf32, #tpu.memory_space<vmem>>, vector<4x128xf32>
    %207 = vector.shape_cast %206 : vector<4x128xf32> to vector<4x1x128xf32>
    %208 = vector.extract_strided_slice %78 {offsets = [14, 0, 0], sizes = [1, 8, 128], strides = [1, 1, 1]} : vector<16x8x128xf32> to vector<1x8x128xf32>
    %209 = vector.shape_cast %208 : vector<1x8x128xf32> to vector<8x128xf32>
    %210 = vector.shape_cast %209 : vector<8x128xf32> to vector<1x8x128xf32>
    %211 = vector.broadcast %207 : vector<4x1x128xf32> to vector<4x8x128xf32>
    %212 = vector.broadcast %210 : vector<1x8x128xf32> to vector<4x8x128xf32>
    %213 = arith.mulf %211, %212 : vector<4x8x128xf32>
    %214 = arith.addf %205, %213 : vector<4x8x128xf32>
    %c264 = arith.constant 264 : index
    %c0_43 = arith.constant 0 : index
    %215 = vector.load %arg2[%c264, %c0_43] : memref<296x128xf32, #tpu.memory_space<vmem>>, vector<4x128xf32>
    %216 = vector.shape_cast %215 : vector<4x128xf32> to vector<4x1x128xf32>
    %217 = vector.extract_strided_slice %78 {offsets = [15, 0, 0], sizes = [1, 8, 128], strides = [1, 1, 1]} : vector<16x8x128xf32> to vector<1x8x128xf32>
    %218 = vector.shape_cast %217 : vector<1x8x128xf32> to vector<8x128xf32>
    %219 = vector.shape_cast %218 : vector<8x128xf32> to vector<1x8x128xf32>
    %220 = vector.broadcast %216 : vector<4x1x128xf32> to vector<4x8x128xf32>
    %221 = vector.broadcast %219 : vector<1x8x128xf32> to vector<4x8x128xf32>
    %222 = arith.mulf %220, %221 : vector<4x8x128xf32>
    %223 = arith.addf %214, %222 : vector<4x8x128xf32>
    %c272 = arith.constant 272 : index
    %c0_44 = arith.constant 0 : index
    %224 = vector.load %arg2[%c272, %c0_44] : memref<296x128xf32, #tpu.memory_space<vmem>>, vector<4x128xf32>
    %225 = vector.shape_cast %224 : vector<4x128xf32> to vector<4x1x128xf32>
    %226 = vector.broadcast %225 : vector<4x1x128xf32> to vector<4x8x128xf32>
    %227 = arith.addf %223, %226 : vector<4x8x128xf32>
    %c280 = arith.constant 280 : index
    %c0_45 = arith.constant 0 : index
    %228 = vector.load %arg2[%c280, %c0_45] : memref<296x128xf32, #tpu.memory_space<vmem>>, vector<8x128xf32>
    %229 = vector.shape_cast %228 : vector<8x128xf32> to vector<1x8x128xf32>
    %230 = vector.broadcast %229 : vector<1x8x128xf32> to vector<4x8x128xf32>
    %231 = arith.mulf %227, %230 : vector<4x8x128xf32>
    %232 = vector.extract_strided_slice %231 {offsets = [0, 0, 0], sizes = [4, 2, 128], strides = [1, 1, 1]} : vector<4x8x128xf32> to vector<4x2x128xf32>
    %233 = vector.extract_strided_slice %231 {offsets = [0, 2, 0], sizes = [4, 2, 128], strides = [1, 1, 1]} : vector<4x8x128xf32> to vector<4x2x128xf32>
    %234 = arith.addf %232, %233 : vector<4x2x128xf32>
    %235 = vector.extract_strided_slice %231 {offsets = [0, 4, 0], sizes = [4, 2, 128], strides = [1, 1, 1]} : vector<4x8x128xf32> to vector<4x2x128xf32>
    %236 = arith.addf %234, %235 : vector<4x2x128xf32>
    %237 = vector.extract_strided_slice %231 {offsets = [0, 6, 0], sizes = [4, 2, 128], strides = [1, 1, 1]} : vector<4x8x128xf32> to vector<4x2x128xf32>
    %238 = arith.addf %236, %237 : vector<4x2x128xf32>
    %c288 = arith.constant 288 : index
    %c0_46 = arith.constant 0 : index
    %239 = vector.load %arg2[%c288, %c0_46] : memref<296x128xf32, #tpu.memory_space<vmem>>, vector<1x128xf32>
    %240 = vector.shape_cast %239 : vector<1x128xf32> to vector<1x1x128xf32>
    %241 = vector.broadcast %240 : vector<1x1x128xf32> to vector<4x2x128xf32>
    %242 = arith.addf %238, %241 : vector<4x2x128xf32>
    %cst_47 = arith.constant 0.000000e+00 : f32
    %243 = vector.broadcast %cst_47 : f32 to vector<4x2x128xf32>
    %244 = arith.maximumf %242, %243 : vector<4x2x128xf32>
    %c0_48 = arith.constant 0 : index
    %c0_49 = arith.constant 0 : index
    %c0_50 = arith.constant 0 : index
    %245 = vector.load %arg3[%c0_48, %c0_49, %c0_50] : memref<4x2x128xf32, #tpu.memory_space<vmem>>, vector<4x2x128xf32>
    tpu.vector_store %arg3[%c0_48, %c0_49, %c0_50], %244 {strides = array<i32>} : memref<4x2x128xf32, #tpu.memory_space<vmem>>, vector<4x2x128xf32>,
    return
  }
  func.func @transform_0(%arg0: i32) -> (i32, i32, i32) {
    %c0_i32 = arith.constant 0 : i32
    %c0_i32_0 = arith.constant 0 : i32
    %c0_i32_1 = arith.constant 0 : i32
    return %c0_i32, %c0_i32_0, %arg0 : i32, i32, i32
  }
  func.func @transform_1(%arg0: i32) -> (i32, i32) {
    %c0_i32 = arith.constant 0 : i32
    %c0_i32_0 = arith.constant 0 : i32
    return %c0_i32, %arg0 : i32, i32
  }
  func.func @transform_2(%arg0: i32) -> (i32, i32, i32) {
    %c0_i32 = arith.constant 0 : i32
    %c0_i32_0 = arith.constant 0 : i32
    %c0_i32_1 = arith.constant 0 : i32
    return %c0_i32, %c0_i32_0, %arg0 : i32, i32, i32
  }
}

</mosaic_0001>

<llo_original>
// kernel: local_linear_forward.1
$region0: #{local_linear_forward.1}
  #allocation0 [shape = 'u32[]', space=smem, size = 0x4, offset = 0x4, fixed_abs, tag = 'smem constant byte address 0x4 - core index']
  #allocation1 [shape = 'u32[72,128]{1,0:T(1,128)}', space=vmem, size = 0x9000, scoped, tag = 'internal scratch']
  %s0 = inlined_call_operand.vmem [shape: f32[8,8,256], index: 0, kind: input, shape index: {}]
  %s1 = inlined_call_operand.vmem [shape: f32[296,256], index: 1, kind: input, shape index: {}]
  %s2 = inlined_call_operand.vmem [shape: f32[4,2,256], index: 2, kind: output, shape index: {}]
  %s3 = sld [smem:[#allocation0]]
  $region154: #{local_linear_forward.1} parent=0
    _
  %s5 = ssub.s32 1, %s3
  %s6 = scalar_select 0, %s5, %s3
  $region1: #{local_linear_forward.1} parent=0
    #allocation2 [shape = 'u8[65536]{0}', space=vmem, size = 0x10000, scoped, tag = 'input window, operand 0']
    #allocation3 [shape = 'u8[303104]{0}', space=vmem, size = 0x4a000, scoped, tag = 'input window, operand 1']
    #allocation4 [shape = 'u8[8192]{0}', space=vmem, size = 0x2000, scoped, tag = 'output window, operand 0']
    loop: start=0, step=1, limit=4
    $region2: #{local_linear_forward.1} parent=1 // loop_pre_header
      _
    $region3: #{local_linear_forward.1} parent=1 // loop_header
      %s8 = sphi 0, %s12
      %p9 = scmp.ge.s32.totalorder %s8, 4
      %s18 = sphi 0, %s20
      %s21 = sphi 0, %s18
      %s22 = sphi 0, %s21
      %s38 = sphi 0, %s22
      %s44 = sphi 0, %s46
      %s47 = sphi 0, %s44
      %s48 = sphi 0, %s47
      %s64 = sphi 0, %s48
      %s70 = sphi 0, %s72
      %s73 = sphi 0, %s70
      %s74 = sphi 0, %s73
      %s90 = sphi 0, %s74
    $region4: #{local_linear_forward.1} parent=1 // loop_header_branch
      %11 = sbr.rel (%p9) target = $region8
    $region5: #{local_linear_forward.1} parent=1 // loop_body
      %s13 = ssub.s32 %s8, 1
      %s14 = ssub.s32 %s8, 2
      %s15 = sadd.s32 %s8, 1
      %s16 = ssub.s32 %s8, %s15
      %p17 = scmp.eq.s32.totalorder %s16, 0
      %s19 = sadd.s32 %s18, 1
      %s20 = scalar_select %p17, %s18, %s19
      %p23 = pneg %p17
      %p24 = scmp.eq.s32.totalorder %s8, 1
      %p25 = por %p23, %p24
      %p26 = scmp.ne.s32.totalorder %s18, %s21
      %p27 = scmp.eq.s32.totalorder %s8, 0
      %p28 = por %p26, %p27
      %p29 = scmp.ne.s32.totalorder %s18, %s21
      %p30 = scmp.eq.s32.totalorder %s13, 1
      %p31 = por %p29, %p30
      %p32 = scmp.ne.s32.totalorder %s21, %s22
      %p33 = scmp.eq.s32.totalorder %s13, 0
      %p34 = por %p32, %p33
      %p35 = scmp.ne.s32.totalorder %s21, %s22
      %p36 = scmp.eq.s32.totalorder %s14, 1
      %p37 = por %p35, %p36
      %p39 = scmp.ne.s32.totalorder %s22, %s38
      %p40 = scmp.eq.s32.totalorder %s14, 0
      %p41 = por %p39, %p40
      %s42 = ssub.s32 %s8, %s15
      %p43 = scmp.eq.s32.totalorder %s42, 0
      %s45 = sadd.s32 %s44, 1
      %s46 = scalar_select %p43, %s44, %s45
      %p49 = pneg %p43
      %p50 = scmp.eq.s32.totalorder %s8, 1
      %p51 = por %p49, %p50
      %p52 = scmp.ne.s32.totalorder %s44, %s47
      %p53 = scmp.eq.s32.totalorder %s8, 0
      %p54 = por %p52, %p53
      %p55 = scmp.ne.s32.totalorder %s44, %s47
      %p56 = scmp.eq.s32.totalorder %s13, 1
      %p57 = por %p55, %p56
      %p58 = scmp.ne.s32.totalorder %s47, %s48
      %p59 = scmp.eq.s32.totalorder %s13, 0
      %p60 = por %p58, %p59
      %p61 = scmp.ne.s32.totalorder %s47, %s48
      %p62 = scmp.eq.s32.totalorder %s14, 1
      %p63 = por %p61, %p62
      %p65 = scmp.ne.s32.totalorder %s48, %s64
      %p66 = scmp.eq.s32.totalorder %s14, 0
      %p67 = por %p65, %p66
      %s68 = ssub.s32 %s8, %s15
      %p69 = scmp.eq.s32.totalorder %s68, 0
      %s71 = sadd.s32 %s70, 1
      %s72 = scalar_select %p69, %s70, %s71
      %p75 = pneg %p69
      %p76 = scmp.eq.s32.totalorder %s8, 1
      %p77 = por %p75, %p76
      %p78 = scmp.ne.s32.totalorder %s70, %s73
      %p79 = scmp.eq.s32.totalorder %s8, 0
      %p80 = por %p78, %p79
      %p81 = scmp.ne.s32.totalorder %s70, %s73
      %p82 = scmp.eq.s32.totalorder %s13, 1
      %p83 = por %p81, %p82
      %p84 = scmp.ne.s32.totalorder %s73, %s74
      %p85 = scmp.eq.s32.totalorder %s13, 0
      %p86 = por %p84, %p85
      %p87 = scmp.ne.s32.totalorder %s73, %s74
      %p88 = scmp.eq.s32.totalorder %s14, 1
      %p89 = por %p87, %p88
      %p91 = scmp.ne.s32.totalorder %s74, %s90
      %p92 = scmp.eq.s32.totalorder %s14, 0
      %p93 = por %p91, %p92
      %p94 = scmp.le.s32.totalorder 1, %s8
      %p95 = scmp.lt.s32.totalorder %s8, 3
      %p96 = pnand %p94, %p95
      %p97 = pneg %p96
      // Predicated region
      $region9: #{local_linear_forward.1} parent=5 // pred_check
        _
      $region10: #{local_linear_forward.1} parent=5 // pred_check_branch
        %99 = sbr.rel (%p96) target = $region12
      $region11: #{local_linear_forward.1} parent=5 // pred_region
        %s100 = ssub.s32 %s8, 1
      $region12: #{local_linear_forward.1} parent=5 // pred_fallthru
        _
      %p101 = scmp.lt.s32.totalorder %s8, 2
      // Predicated region
      $region13: #{local_linear_forward.1} parent=5 // pred_check
        %p102 = pneg %p101
      $region14: #{local_linear_forward.1} parent=5 // pred_check_branch
        %104 = sbr.rel (%p102) target = $region16
      $region15: #{local_linear_forward.1} parent=5 // pred_region
        // Predicated region
        $region17: #{local_linear_forward.1} parent=15 // pred_check
          %p105 = pneg %p28
        $region18: #{local_linear_forward.1} parent=15 // pred_check_branch
          %107 = sbr.rel (%p105) target = $region20
        $region19: #{local_linear_forward.1} parent=15 // pred_region
          %s108 = sand.u32 %s18, 1
          %s109 = sand.u32 %s18, 1
          %s110 = smul.addr %s109, 64
          %s111 = scalar_lea.vmem [#allocation2], %s110
          %s112 = smul.addr %s8, 8
          %s113 = scalar_lea.vmem %s0, %s112
          // Predicated region
          $region21: #{local_linear_forward.1} parent=19 // pred_check
            _
          $region22: #{local_linear_forward.1} parent=19 // pred_check_branch
            %115 = sbr.rel (0) target = $region24
          $region23: #{local_linear_forward.1} parent=19 // pred_region
            // Predicated region
            $region25: #{local_linear_forward.1} parent=23 // pred_check
              _
            $region26: #{local_linear_forward.1} parent=23 // pred_check_branch
              %117 = sbr.rel (0) target = $region28
            $region27: #{local_linear_forward.1} parent=23 // pred_region
              // Predicated region
              $region40: #{local_linear_forward.1} parent=27 // pred_check
                _
              $region41: #{local_linear_forward.1} parent=27 // pred_check_branch
                %147 = sbr.rel (0) target = $region43
              $region42: #{local_linear_forward.1} parent=27 // pred_region
                loop: start=0, step=1, limit=1
                $region44: #{local_linear_forward.1} parent=42 // loop_pre_header
                  _
                $region45: #{local_linear_forward.1} parent=42 // loop_header
                  %s149 = sphi 0, %s153
                  %p150 = scmp.ge.s32.totalorder %s149, 1
                  %s154 = sphi %s113, %s113
                  %s155 = sphi %s111, %s111
                $region46: #{local_linear_forward.1} parent=42 // loop_header_branch
                  %152 = sbr.rel (%p150) target = $region50
                $region47: #{local_linear_forward.1} parent=42 // loop_body
                  %v156 = vld [vmem:[%s154] sm:$0xff]
                  %157 = vst [vmem:[%s155] sm:$0xff] %v156
                  %v158 = vld [vmem:[%s154 + $0x10] sm:$0xff]
                  %159 = vst [vmem:[%s155 + $0x8] sm:$0xff] %v158
                  %v160 = vld [vmem:[%s154 + $0x20] sm:$0xff]
                  %161 = vst [vmem:[%s155 + $0x10] sm:$0xff] %v160
                  %v162 = vld [vmem:[%s154 + $0x30] sm:$0xff]
                  %163 = vst [vmem:[%s155 + $0x18] sm:$0xff] %v162
                  %v164 = vld [vmem:[%s154 + $0x40] sm:$0xff]
                  %165 = vst [vmem:[%s155 + $0x20] sm:$0xff] %v164
                  %v166 = vld [vmem:[%s154 + $0x50] sm:$0xff]
                  %167 = vst [vmem:[%s155 + $0x28] sm:$0xff] %v166
                  %v168 = vld [vmem:[%s154 + $0x60] sm:$0xff]
                  %169 = vst [vmem:[%s155 + $0x30] sm:$0xff] %v168
                  %v170 = vld [vmem:[%s154 + $0x70] sm:$0xff]
                  %171 = vst [vmem:[%s155 + $0x38] sm:$0xff] %v170
                $region48: #{local_linear_forward.1} parent=42 // loop_footer
                  %s153 = sadd.s32 1, %s149
                $region49: #{local_linear_forward.1} parent=42 // loop_footer_branch
                  %148 = sbr.rel target = $region45
                $region50: #{local_linear_forward.1} parent=42 // loop_exit
                  _
              $region43: #{local_linear_forward.1} parent=27 // pred_fallthru
                _
              // Predicated region
              $region51: #{local_linear_forward.1} parent=27 // pred_check
                _
              $region52: #{local_linear_forward.1} parent=27 // pred_check_branch
                %173 = sbr.rel target = $region54
              $region53: #{local_linear_forward.1} parent=27 // pred_region
                _
              $region54: #{local_linear_forward.1} parent=27 // pred_fallthru
                _
            $region28: #{local_linear_forward.1} parent=23 // pred_fallthru
              _
            // Predicated region
            $region29: #{local_linear_forward.1} parent=23 // pred_check
              _
            $region30: #{local_linear_forward.1} parent=23 // pred_check_branch
              %119 = sbr.rel target = $region32
            $region31: #{local_linear_forward.1} parent=23 // pred_region
              %s121 = ssub.s32 256, 1
              loop: start=0, step=1, limit=1
              $region33: #{local_linear_forward.1} parent=31 // loop_pre_header
                _
              $region34: #{local_linear_forward.1} parent=31 // loop_header
                %s123 = sphi 0, %s127
                %p124 = scmp.ge.s32.totalorder %s123, 1
                %s128 = sphi %s113, %s113
                %s129 = sphi %s111, %s111
              $region35: #{local_linear_forward.1} parent=31 // loop_header_branch
                %126 = sbr.rel (%p124) target = $region39
              $region36: #{local_linear_forward.1} parent=31 // loop_body
                %v130 = vld [vmem:[%s128] sm:%s121]
                %131 = vst [vmem:[%s129] sm:%s121] %v130
                %v132 = vld [vmem:[%s128 + $0x10] sm:%s121]
                %133 = vst [vmem:[%s129 + $0x8] sm:%s121] %v132
                %v134 = vld [vmem:[%s128 + $0x20] sm:%s121]
                %135 = vst [vmem:[%s129 + $0x10] sm:%s121] %v134
                %v136 = vld [vmem:[%s128 + $0x30] sm:%s121]
                %137 = vst [vmem:[%s129 + $0x18] sm:%s121] %v136
                %v138 = vld [vmem:[%s128 + $0x40] sm:%s121]
                %139 = vst [vmem:[%s129 + $0x20] sm:%s121] %v138
                %v140 = vld [vmem:[%s128 + $0x50] sm:%s121]
                %141 = vst [vmem:[%s129 + $0x28] sm:%s121] %v140
                %v142 = vld [vmem:[%s128 + $0x60] sm:%s121]
                %143 = vst [vmem:[%s129 + $0x30] sm:%s121] %v142
                %v144 = vld [vmem:[%s128 + $0x70] sm:%s121]
                %145 = vst [vmem:[%s129 + $0x38] sm:%s121] %v144
              $region37: #{local_linear_forward.1} parent=31 // loop_footer
                %s127 = sadd.s32 1, %s123
              $region38: #{local_linear_forward.1} parent=31 // loop_footer_branch
                %122 = sbr.rel target = $region34
              $region39: #{local_linear_forward.1} parent=31 // loop_exit
                _
            $region32: #{local_linear_forward.1} parent=23 // pred_fallthru
              _
          $region24: #{local_linear_forward.1} parent=19 // pred_fallthru
            _
          %174 = vnop
        $region20: #{local_linear_forward.1} parent=15 // pred_fallthru
          _
        // Predicated region
        $region55: #{local_linear_forward.1} parent=15 // pred_check
          %p175 = pneg %p54
        $region56: #{local_linear_forward.1} parent=15 // pred_check_branch
          %177 = sbr.rel (%p175) target = $region58
        $region57: #{local_linear_forward.1} parent=15 // pred_region
          %s178 = sand.u32 %s44, 1
          %s179 = sand.u32 %s44, 1
          %s180 = smul.addr %s179, 296
          %s181 = scalar_lea.vmem [#allocation3], %s180
          %s182 = smul.addr %s8, 8
          %s183 = scalar_lea.vmem %s1, %s182
          // Predicated region
          $region59: #{local_linear_forward.1} parent=57 // pred_check
            _
          $region60: #{local_linear_forward.1} parent=57 // pred_check_branch
            %185 = sbr.rel (0) target = $region62
          $region61: #{local_linear_forward.1} parent=57 // pred_region
            // Predicated region
            $region63: #{local_linear_forward.1} parent=61 // pred_check
              _
            $region64: #{local_linear_forward.1} parent=61 // pred_check_branch
              %187 = sbr.rel (0) target = $region66
            $region65: #{local_linear_forward.1} parent=61 // pred_region
              // Predicated region
              $region78: #{local_linear_forward.1} parent=65 // pred_check
                _
              $region79: #{local_linear_forward.1} parent=65 // pred_check_branch
                %275 = sbr.rel (0) target = $region81
              $region80: #{local_linear_forward.1} parent=65 // pred_region
                loop: start=0, step=1, limit=1
                $region82: #{local_linear_forward.1} parent=80 // loop_pre_header
                  _
                $region83: #{local_linear_forward.1} parent=80 // loop_header
                  %s277 = sphi 0, %s281
                  %p278 = scmp.ge.s32.totalorder %s277, 1
                  %s282 = sphi %s183, %s183
                  %s283 = sphi %s181, %s181
                $region84: #{local_linear_forward.1} parent=80 // loop_header_branch
                  %280 = sbr.rel (%p278) target = $region88
                $region85: #{local_linear_forward.1} parent=80 // loop_body
                  %v284 = vld [vmem:[%s282] sm:$0xff]
                  %285 = vst [vmem:[%s283] sm:$0xff] %v284
                  %v286 = vld [vmem:[%s282 + $0x10] sm:$0xff]
                  %287 = vst [vmem:[%s283 + $0x8] sm:$0xff] %v286
                  %v288 = vld [vmem:[%s282 + $0x20] sm:$0xff]
                  %289 = vst [vmem:[%s283 + $0x10] sm:$0xff] %v288
                  %v290 = vld [vmem:[%s282 + $0x30] sm:$0xff]
                  %291 = vst [vmem:[%s283 + $0x18] sm:$0xff] %v290
                  %v292 = vld [vmem:[%s282 + $0x40] sm:$0xff]
                  %293 = vst [vmem:[%s283 + $0x20] sm:$0xff] %v292
                  %v294 = vld [vmem:[%s282 + $0x50] sm:$0xff]
                  %295 = vst [vmem:[%s283 + $0x28] sm:$0xff] %v294
                  %v296 = vld [vmem:[%s282 + $0x60] sm:$0xff]
                  %297 = vst [vmem:[%s283 + $0x30] sm:$0xff] %v296
                  %v298 = vld [vmem:[%s282 + $0x70] sm:$0xff]
                  %299 = vst [vmem:[%s283 + $0x38] sm:$0xff] %v298
                  %v300 = vld [vmem:[%s282 + $0x80] sm:$0xff]
                  %301 = vst [vmem:[%s283 + $0x40] sm:$0xff] %v300
                  %v302 = vld [vmem:[%s282 + $0x90] sm:$0xff]
                  %303 = vst [vmem:[%s283 + $0x48] sm:$0xff] %v302
                  %v304 = vld [vmem:[%s282 + $0xa0] sm:$0xff]
                  %305 = vst [vmem:[%s283 + $0x50] sm:$0xff] %v304
                  %v306 = vld [vmem:[%s282 + $0xb0] sm:$0xff]
                  %307 = vst [vmem:[%s283 + $0x58] sm:$0xff] %v306
                  %v308 = vld [vmem:[%s282 + $0xc0] sm:$0xff]
                  %309 = vst [vmem:[%s283 + $0x60] sm:$0xff] %v308
                  %v310 = vld [vmem:[%s282 + $0xd0] sm:$0xff]
                  %311 = vst [vmem:[%s283 + $0x68] sm:$0xff] %v310
                  %v312 = vld [vmem:[%s282 + $0xe0] sm:$0xff]
                  %313 = vst [vmem:[%s283 + $0x70] sm:$0xff] %v312
                  %v314 = vld [vmem:[%s282 + $0xf0] sm:$0xff]
                  %315 = vst [vmem:[%s283 + $0x78] sm:$0xff] %v314
                  %v316 = vld [vmem:[%s282 + $0x100] sm:$0xff]
                  %317 = vst [vmem:[%s283 + $0x80] sm:$0xff] %v316
                  %v318 = vld [vmem:[%s282 + $0x110] sm:$0xff]
                  %319 = vst [vmem:[%s283 + $0x88] sm:$0xff] %v318
                  %v320 = vld [vmem:[%s282 + $0x120] sm:$0xff]
                  %321 = vst [vmem:[%s283 + $0x90] sm:$0xff] %v320
                  %v322 = vld [vmem:[%s282 + $0x130] sm:$0xff]
                  %323 = vst [vmem:[%s283 + $0x98] sm:$0xff] %v322
                  %v324 = vld [vmem:[%s282 + $0x140] sm:$0xff]
                  %325 = vst [vmem:[%s283 + $0xa0] sm:$0xff] %v324
                  %v326 = vld [vmem:[%s282 + $0x150] sm:$0xff]
                  %327 = vst [vmem:[%s283 + $0xa8] sm:$0xff] %v326
                  %v328 = vld [vmem:[%s282 + $0x160] sm:$0xff]
                  %329 = vst [vmem:[%s283 + $0xb0] sm:$0xff] %v328
                  %v330 = vld [vmem:[%s282 + $0x170] sm:$0xff]
                  %331 = vst [vmem:[%s283 + $0xb8] sm:$0xff] %v330
                  %v332 = vld [vmem:[%s282 + $0x180] sm:$0xff]
                  %333 = vst [vmem:[%s283 + $0xc0] sm:$0xff] %v332
                  %v334 = vld [vmem:[%s282 + $0x190] sm:$0xff]
                  %335 = vst [vmem:[%s283 + $0xc8] sm:$0xff] %v334
                  %v336 = vld [vmem:[%s282 + $0x1a0] sm:$0xff]
                  %337 = vst [vmem:[%s283 + $0xd0] sm:$0xff] %v336
                  %v338 = vld [vmem:[%s282 + $0x1b0] sm:$0xff]
                  %339 = vst [vmem:[%s283 + $0xd8] sm:$0xff] %v338
                  %v340 = vld [vmem:[%s282 + $0x1c0] sm:$0xff]
                  %341 = vst [vmem:[%s283 + $0xe0] sm:$0xff] %v340
                  %v342 = vld [vmem:[%s282 + $0x1d0] sm:$0xff]
                  %343 = vst [vmem:[%s283 + $0xe8] sm:$0xff] %v342
                  %v344 = vld [vmem:[%s282 + $0x1e0] sm:$0xff]
                  %345 = vst [vmem:[%s283 + $0xf0] sm:$0xff] %v344
                  %v346 = vld [vmem:[%s282 + $0x1f0] sm:$0xff]
                  %347 = vst [vmem:[%s283 + $0xf8] sm:$0xff] %v346
                  %v348 = vld [vmem:[%s282 + $0x200] sm:$0xff]
                  %349 = vst [vmem:[%s283 + $0x100] sm:$0xff] %v348
                  %v350 = vld [vmem:[%s282 + $0x210] sm:$0xff]
                  %351 = vst [vmem:[%s283 + $0x108] sm:$0xff] %v350
                  %v352 = vld [vmem:[%s282 + $0x220] sm:$0xff]
                  %353 = vst [vmem:[%s283 + $0x110] sm:$0xff] %v352
                  %v354 = vld [vmem:[%s282 + $0x230] sm:$0xff]
                  %355 = vst [vmem:[%s283 + $0x118] sm:$0xff] %v354
                  %v356 = vld [vmem:[%s282 + $0x240] sm:$0xff]
                  %357 = vst [vmem:[%s283 + $0x120] sm:$0xff] %v356
                $region86: #{local_linear_forward.1} parent=80 // loop_footer
                  %s281 = sadd.s32 1, %s277
                $region87: #{local_linear_forward.1} parent=80 // loop_footer_branch
                  %276 = sbr.rel target = $region83
                $region88: #{local_linear_forward.1} parent=80 // loop_exit
                  _
              $region81: #{local_linear_forward.1} parent=65 // pred_fallthru
                _
              // Predicated region
              $region89: #{local_linear_forward.1} parent=65 // pred_check
                _
              $region90: #{local_linear_forward.1} parent=65 // pred_check_branch
                %359 = sbr.rel target = $region92
              $region91: #{local_linear_forward.1} parent=65 // pred_region
                _
              $region92: #{local_linear_forward.1} parent=65 // pred_fallthru
                _
            $region66: #{local_linear_forward.1} parent=61 // pred_fallthru
              _
            // Predicated region
            $region67: #{local_linear_forward.1} parent=61 // pred_check
              _
            $region68: #{local_linear_forward.1} parent=61 // pred_check_branch
              %189 = sbr.rel target = $region70
            $region69: #{local_linear_forward.1} parent=61 // pred_region
              %s191 = ssub.s32 256, 1
              loop: start=0, step=1, limit=1
              $region71: #{local_linear_forward.1} parent=69 // loop_pre_header
                _
              $region72: #{local_linear_forward.1} parent=69 // loop_header
                %s193 = sphi 0, %s197
                %p194 = scmp.ge.s32.totalorder %s193, 1
                %s198 = sphi %s183, %s183
                %s199 = sphi %s181, %s181
              $region73: #{local_linear_forward.1} parent=69 // loop_header_branch
                %196 = sbr.rel (%p194) target = $region77
              $region74: #{local_linear_forward.1} parent=69 // loop_body
                %v200 = vld [vmem:[%s198] sm:%s191]
                %201 = vst [vmem:[%s199] sm:%s191] %v200
                %v202 = vld [vmem:[%s198 + $0x10] sm:%s191]
                %203 = vst [vmem:[%s199 + $0x8] sm:%s191] %v202
                %v204 = vld [vmem:[%s198 + $0x20] sm:%s191]
                %205 = vst [vmem:[%s199 + $0x10] sm:%s191] %v204
                %v206 = vld [vmem:[%s198 + $0x30] sm:%s191]
                %207 = vst [vmem:[%s199 + $0x18] sm:%s191] %v206
                %v208 = vld [vmem:[%s198 + $0x40] sm:%s191]
                %209 = vst [vmem:[%s199 + $0x20] sm:%s191] %v208
                %v210 = vld [vmem:[%s198 + $0x50] sm:%s191]
                %211 = vst [vmem:[%s199 + $0x28] sm:%s191] %v210
                %v212 = vld [vmem:[%s198 + $0x60] sm:%s191]
                %213 = vst [vmem:[%s199 + $0x30] sm:%s191] %v212
                %v214 = vld [vmem:[%s198 + $0x70] sm:%s191]
                %215 = vst [vmem:[%s199 + $0x38] sm:%s191] %v214
                %v216 = vld [vmem:[%s198 + $0x80] sm:%s191]
                %217 = vst [vmem:[%s199 + $0x40] sm:%s191] %v216
                %v218 = vld [vmem:[%s198 + $0x90] sm:%s191]
                %219 = vst [vmem:[%s199 + $0x48] sm:%s191] %v218
                %v220 = vld [vmem:[%s198 + $0xa0] sm:%s191]
                %221 = vst [vmem:[%s199 + $0x50] sm:%s191] %v220
                %v222 = vld [vmem:[%s198 + $0xb0] sm:%s191]
                %223 = vst [vmem:[%s199 + $0x58] sm:%s191] %v222
                %v224 = vld [vmem:[%s198 + $0xc0] sm:%s191]
                %225 = vst [vmem:[%s199 + $0x60] sm:%s191] %v224
                %v226 = vld [vmem:[%s198 + $0xd0] sm:%s191]
                %227 = vst [vmem:[%s199 + $0x68] sm:%s191] %v226
                %v228 = vld [vmem:[%s198 + $0xe0] sm:%s191]
                %229 = vst [vmem:[%s199 + $0x70] sm:%s191] %v228
                %v230 = vld [vmem:[%s198 + $0xf0] sm:%s191]
                %231 = vst [vmem:[%s199 + $0x78] sm:%s191] %v230
                %v232 = vld [vmem:[%s198 + $0x100] sm:%s191]
                %233 = vst [vmem:[%s199 + $0x80] sm:%s191] %v232
                %v234 = vld [vmem:[%s198 + $0x110] sm:%s191]
                %235 = vst [vmem:[%s199 + $0x88] sm:%s191] %v234
                %v236 = vld [vmem:[%s198 + $0x120] sm:%s191]
                %237 = vst [vmem:[%s199 + $0x90] sm:%s191] %v236
                %v238 = vld [vmem:[%s198 + $0x130] sm:%s191]
                %239 = vst [vmem:[%s199 + $0x98] sm:%s191] %v238
                %v240 = vld [vmem:[%s198 + $0x140] sm:%s191]
                %241 = vst [vmem:[%s199 + $0xa0] sm:%s191] %v240
                %v242 = vld [vmem:[%s198 + $0x150] sm:%s191]
                %243 = vst [vmem:[%s199 + $0xa8] sm:%s191] %v242
                %v244 = vld [vmem:[%s198 + $0x160] sm:%s191]
                %245 = vst [vmem:[%s199 + $0xb0] sm:%s191] %v244
                %v246 = vld [vmem:[%s198 + $0x170] sm:%s191]
                %247 = vst [vmem:[%s199 + $0xb8] sm:%s191] %v246
                %v248 = vld [vmem:[%s198 + $0x180] sm:%s191]
                %249 = vst [vmem:[%s199 + $0xc0] sm:%s191] %v248
                %v250 = vld [vmem:[%s198 + $0x190] sm:%s191]
                %251 = vst [vmem:[%s199 + $0xc8] sm:%s191] %v250
                %v252 = vld [vmem:[%s198 + $0x1a0] sm:%s191]
                %253 = vst [vmem:[%s199 + $0xd0] sm:%s191] %v252
                %v254 = vld [vmem:[%s198 + $0x1b0] sm:%s191]
                %255 = vst [vmem:[%s199 + $0xd8] sm:%s191] %v254
                %v256 = vld [vmem:[%s198 + $0x1c0] sm:%s191]
                %257 = vst [vmem:[%s199 + $0xe0] sm:%s191] %v256
                %v258 = vld [vmem:[%s198 + $0x1d0] sm:%s191]
                %259 = vst [vmem:[%s199 + $0xe8] sm:%s191] %v258
                %v260 = vld [vmem:[%s198 + $0x1e0] sm:%s191]
                %261 = vst [vmem:[%s199 + $0xf0] sm:%s191] %v260
                %v262 = vld [vmem:[%s198 + $0x1f0] sm:%s191]
                %263 = vst [vmem:[%s199 + $0xf8] sm:%s191] %v262
                %v264 = vld [vmem:[%s198 + $0x200] sm:%s191]
                %265 = vst [vmem:[%s199 + $0x100] sm:%s191] %v264
                %v266 = vld [vmem:[%s198 + $0x210] sm:%s191]
                %267 = vst [vmem:[%s199 + $0x108] sm:%s191] %v266
                %v268 = vld [vmem:[%s198 + $0x220] sm:%s191]
                %269 = vst [vmem:[%s199 + $0x110] sm:%s191] %v268
                %v270 = vld [vmem:[%s198 + $0x230] sm:%s191]
                %271 = vst [vmem:[%s199 + $0x118] sm:%s191] %v270
                %v272 = vld [vmem:[%s198 + $0x240] sm:%s191]
                %273 = vst [vmem:[%s199 + $0x120] sm:%s191] %v272
              $region75: #{local_linear_forward.1} parent=69 // loop_footer
                %s197 = sadd.s32 1, %s193
              $region76: #{local_linear_forward.1} parent=69 // loop_footer_branch
                %192 = sbr.rel target = $region72
              $region77: #{local_linear_forward.1} parent=69 // loop_exit
                _
            $region70: #{local_linear_forward.1} parent=61 // pred_fallthru
              _
          $region62: #{local_linear_forward.1} parent=57 // pred_fallthru
            _
          %360 = vnop
        $region58: #{local_linear_forward.1} parent=15 // pred_fallthru
          _
      $region16: #{local_linear_forward.1} parent=5 // pred_fallthru
        _
      %p361 = scmp.le.s32.totalorder 1, %s8
      %p362 = scmp.lt.s32.totalorder %s8, 3
      %p363 = pnand %p361, %p362
      %p364 = pneg %p363
      // Predicated region
      $region93: #{local_linear_forward.1} parent=5 // pred_check
        _
      $region94: #{local_linear_forward.1} parent=5 // pred_check_branch
        %366 = sbr.rel (%p363) target = $region96
      $region95: #{local_linear_forward.1} parent=5 // pred_region
        %s367 = ssub.s32 %s8, 1
        %s368 = sand.u32 %s21, 1
        %s369 = sand.u32 %s21, 1
        %s370 = smul.addr %s369, 64
        %s371 = scalar_lea.vmem [#allocation2], %s370
        // Predicated region
        $region97: #{local_linear_forward.1} parent=95 // pred_check
          %p372 = pneg %p34
        $region98: #{local_linear_forward.1} parent=95 // pred_check_branch
          %374 = sbr.rel (%p372) target = $region100
        $region99: #{local_linear_forward.1} parent=95 // pred_region
          _
        $region100: #{local_linear_forward.1} parent=95 // pred_fallthru
          _
        %s375 = sand.u32 %s47, 1
        %s376 = sand.u32 %s47, 1
        %s377 = smul.addr %s376, 296
        %s378 = scalar_lea.vmem [#allocation3], %s377
        // Predicated region
        $region101: #{local_linear_forward.1} parent=95 // pred_check
          %p379 = pneg %p60
        $region102: #{local_linear_forward.1} parent=95 // pred_check_branch
          %381 = sbr.rel (%p379) target = $region104
        $region103: #{local_linear_forward.1} parent=95 // pred_region
          _
        $region104: #{local_linear_forward.1} parent=95 // pred_fallthru
          _
        %s382 = sand.u32 %s21, 1
        %s383 = sand.u32 %s21, 1
        %s384 = smul.addr %s383, 64
        %s385 = scalar_lea.vmem [#allocation2], %s384
        %p386 = pneg %p34
        %p387 = pneg %p31
        %s388 = sand.u32 %s47, 1
        %s389 = sand.u32 %s47, 1
        %s390 = smul.addr %s389, 296
        %s391 = scalar_lea.vmem [#allocation3], %s390
        %p392 = pneg %p60
        %p393 = pneg %p57
        %p394 = pneg %p86
        %p395 = pneg %p83
        %s396 = sand.u32 %s73, 1
        %s397 = sand.u32 %s73, 1
        %s398 = smul.addr %s397, 8
        %s399 = scalar_lea.vmem [#allocation4], %s398
        %v400 = vld [vmem:[%s371] sm:$0xff]
        %v401 = vld [vmem:[%s378] sm:$0xff]
        %v402 = vld [vmem:[%s378 + $0x8] sm:$0xff]
        %v405 = vrot.slane %v401, 1
        %v406 = vrot.slane %v401, 2
        %v407 = vrot.slane %v401, 3
        %v408 = vrot.slane %v401, 4
        %v409 = vrot.slane %v401, 5
        %v410 = vrot.slane %v401, 6
        %v411 = vrot.slane %v401, 7
        %v412 = vrot.slane %v402, 1
        %v413 = vrot.slane %v402, 2
        %v414 = vrot.slane %v402, 3
        %v415 = vrot.slane %v402, 4
        %v416 = vrot.slane %v402, 5
        %v417 = vrot.slane %v402, 6
        %v418 = vrot.slane %v402, 7
        %v419 = vperm.slane %v401, 0
        %v420 = vperm.slane %v405, 0
        %v421 = vperm.slane %v406, 0
        %v422 = vperm.slane %v407, 0
        %v423 = vperm.slane %v408, 0
        %v424 = vperm.slane %v409, 0
        %v425 = vperm.slane %v410, 0
        %v426 = vperm.slane %v411, 0
        %v427 = vperm.slane %v402, 0
        %v428 = vperm.slane %v412, 0
        %v429 = vperm.slane %v413, 0
        %v430 = vperm.slane %v414, 0
        %v431 = vperm.slane %v415, 0
        %v432 = vperm.slane %v416, 0
        %v433 = vperm.slane %v417, 0
        %v434 = vperm.slane %v418, 0
        %v451 = vmul.f32 %v419, %v400
        %v452 = vmul.f32 %v420, %v400
        %v453 = vmul.f32 %v421, %v400
        %v454 = vmul.f32 %v422, %v400
        %v455 = vmul.f32 %v423, %v400
        %v456 = vmul.f32 %v424, %v400
        %v457 = vmul.f32 %v425, %v400
        %v458 = vmul.f32 %v426, %v400
        %v459 = vmul.f32 %v427, %v400
        %v460 = vmul.f32 %v428, %v400
        %v461 = vmul.f32 %v429, %v400
        %v462 = vmul.f32 %v430, %v400
        %v463 = vmul.f32 %v431, %v400
        %v464 = vmul.f32 %v432, %v400
        %v465 = vmul.f32 %v433, %v400
        %v466 = vmul.f32 %v434, %v400
        %v467 = vadd.f32 %v451, 0.0
        %v468 = vadd.f32 %v452, 0.0
        %v469 = vadd.f32 %v453, 0.0
        %v470 = vadd.f32 %v454, 0.0
        %v471 = vadd.f32 %v455, 0.0
        %v472 = vadd.f32 %v456, 0.0
        %v473 = vadd.f32 %v457, 0.0
        %v474 = vadd.f32 %v458, 0.0
        %v475 = vadd.f32 %v459, 0.0
        %v476 = vadd.f32 %v460, 0.0
        %v477 = vadd.f32 %v461, 0.0
        %v478 = vadd.f32 %v462, 0.0
        %v479 = vadd.f32 %v463, 0.0
        %v480 = vadd.f32 %v464, 0.0
        %v481 = vadd.f32 %v465, 0.0
        %v482 = vadd.f32 %v466, 0.0
        %s483 = scalar_lea.vmem %s371, 8 [#allocation2]
        %v484 = vld [vmem:[%s483] sm:$0xff]
        %v485 = vld [vmem:[%s378 + $0x10] sm:$0xff]
        %v486 = vld [vmem:[%s378 + $0x18] sm:$0xff]
        %v489 = vrot.slane %v485, 1
        %v490 = vrot.slane %v485, 2
        %v491 = vrot.slane %v485, 3
        %v492 = vrot.slane %v485, 4
        %v493 = vrot.slane %v485, 5
        %v494 = vrot.slane %v485, 6
        %v495 = vrot.slane %v485, 7
        %v496 = vrot.slane %v486, 1
        %v497 = vrot.slane %v486, 2
        %v498 = vrot.slane %v486, 3
        %v499 = vrot.slane %v486, 4
        %v500 = vrot.slane %v486, 5
        %v501 = vrot.slane %v486, 6
        %v502 = vrot.slane %v486, 7
        %v503 = vperm.slane %v485, 0
        %v504 = vperm.slane %v489, 0
        %v505 = vperm.slane %v490, 0
        %v506 = vperm.slane %v491, 0
        %v507 = vperm.slane %v492, 0
        %v508 = vperm.slane %v493, 0
        %v509 = vperm.slane %v494, 0
        %v510 = vperm.slane %v495, 0
        %v511 = vperm.slane %v486, 0
        %v512 = vperm.slane %v496, 0
        %v513 = vperm.slane %v497, 0
        %v514 = vperm.slane %v498, 0
        %v515 = vperm.slane %v499, 0
        %v516 = vperm.slane %v500, 0
        %v517 = vperm.slane %v501, 0
        %v518 = vperm.slane %v502, 0
        %v535 = vmul.f32 %v503, %v484
        %v536 = vmul.f32 %v504, %v484
        %v537 = vmul.f32 %v505, %v484
        %v538 = vmul.f32 %v506, %v484
        %v539 = vmul.f32 %v507, %v484
        %v540 = vmul.f32 %v508, %v484
        %v541 = vmul.f32 %v509, %v484
        %v542 = vmul.f32 %v510, %v484
        %v543 = vmul.f32 %v511, %v484
        %v544 = vmul.f32 %v512, %v484
        %v545 = vmul.f32 %v513, %v484
        %v546 = vmul.f32 %v514, %v484
        %v547 = vmul.f32 %v515, %v484
        %v548 = vmul.f32 %v516, %v484
        %v549 = vmul.f32 %v517, %v484
        %v550 = vmul.f32 %v518, %v484
        %v551 = vadd.f32 %v467, %v535
        %v552 = vadd.f32 %v468, %v536
        %v553 = vadd.f32 %v469, %v537
        %v554 = vadd.f32 %v470, %v538
        %v555 = vadd.f32 %v471, %v539
        %v556 = vadd.f32 %v472, %v540
        %v557 = vadd.f32 %v473, %v541
        %v558 = vadd.f32 %v474, %v542
        %v559 = vadd.f32 %v475, %v543
        %v560 = vadd.f32 %v476, %v544
        %v561 = vadd.f32 %v477, %v545
        %v562 = vadd.f32 %v478, %v546
        %v563 = vadd.f32 %v479, %v547
        %v564 = vadd.f32 %v480, %v548
        %v565 = vadd.f32 %v481, %v549
        %v566 = vadd.f32 %v482, %v550
        %s567 = scalar_lea.vmem %s371, 16 [#allocation2]
        %v568 = vld [vmem:[%s567] sm:$0xff]
        %v569 = vld [vmem:[%s378 + $0x20] sm:$0xff]
        %v570 = vld [vmem:[%s378 + $0x28] sm:$0xff]
        %v573 = vrot.slane %v569, 1
        %v574 = vrot.slane %v569, 2
        %v575 = vrot.slane %v569, 3
        %v576 = vrot.slane %v569, 4
        %v577 = vrot.slane %v569, 5
        %v578 = vrot.slane %v569, 6
        %v579 = vrot.slane %v569, 7
        %v580 = vrot.slane %v570, 1
        %v581 = vrot.slane %v570, 2
        %v582 = vrot.slane %v570, 3
        %v583 = vrot.slane %v570, 4
        %v584 = vrot.slane %v570, 5
        %v585 = vrot.slane %v570, 6
        %v586 = vrot.slane %v570, 7
        %v587 = vperm.slane %v569, 0
        %v588 = vperm.slane %v573, 0
        %v589 = vperm.slane %v574, 0
        %v590 = vperm.slane %v575, 0
        %v591 = vperm.slane %v576, 0
        %v592 = vperm.slane %v577, 0
        %v593 = vperm.slane %v578, 0
        %v594 = vperm.slane %v579, 0
        %v595 = vperm.slane %v570, 0
        %v596 = vperm.slane %v580, 0
        %v597 = vperm.slane %v581, 0
        %v598 = vperm.slane %v582, 0
        %v599 = vperm.slane %v583, 0
        %v600 = vperm.slane %v584, 0
        %v601 = vperm.slane %v585, 0
        %v602 = vperm.slane %v586, 0
        %v619 = vmul.f32 %v587, %v568
        %v620 = vmul.f32 %v588, %v568
        %v621 = vmul.f32 %v589, %v568
        %v622 = vmul.f32 %v590, %v568
        %v623 = vmul.f32 %v591, %v568
        %v624 = vmul.f32 %v592, %v568
        %v625 = vmul.f32 %v593, %v568
        %v626 = vmul.f32 %v594, %v568
        %v627 = vmul.f32 %v595, %v568
        %v628 = vmul.f32 %v596, %v568
        %v629 = vmul.f32 %v597, %v568
        %v630 = vmul.f32 %v598, %v568
        %v631 = vmul.f32 %v599, %v568
        %v632 = vmul.f32 %v600, %v568
        %v633 = vmul.f32 %v601, %v568
        %v634 = vmul.f32 %v602, %v568
        %v635 = vadd.f32 %v551, %v619
        %v636 = vadd.f32 %v552, %v620
        %v637 = vadd.f32 %v553, %v621
        %v638 = vadd.f32 %v554, %v622
        %v639 = vadd.f32 %v555, %v623
        %v640 = vadd.f32 %v556, %v624
        %v641 = vadd.f32 %v557, %v625
        %v642 = vadd.f32 %v558, %v626
        %v643 = vadd.f32 %v559, %v627
        %v644 = vadd.f32 %v560, %v628
        %v645 = vadd.f32 %v561, %v629
        %v646 = vadd.f32 %v562, %v630
        %v647 = vadd.f32 %v563, %v631
        %v648 = vadd.f32 %v564, %v632
        %v649 = vadd.f32 %v565, %v633
        %v650 = vadd.f32 %v566, %v634
        %s651 = scalar_lea.vmem %s371, 24 [#allocation2]
        %v652 = vld [vmem:[%s651] sm:$0xff]
        %v653 = vld [vmem:[%s378 + $0x30] sm:$0xff]
        %v654 = vld [vmem:[%s378 + $0x38] sm:$0xff]
        %v657 = vrot.slane %v653, 1
        %v658 = vrot.slane %v653, 2
        %v659 = vrot.slane %v653, 3
        %v660 = vrot.slane %v653, 4
        %v661 = vrot.slane %v653, 5
        %v662 = vrot.slane %v653, 6
        %v663 = vrot.slane %v653, 7
        %v664 = vrot.slane %v654, 1
        %v665 = vrot.slane %v654, 2
        %v666 = vrot.slane %v654, 3
        %v667 = vrot.slane %v654, 4
        %v668 = vrot.slane %v654, 5
        %v669 = vrot.slane %v654, 6
        %v670 = vrot.slane %v654, 7
        %v671 = vperm.slane %v653, 0
        %v672 = vperm.slane %v657, 0
        %v673 = vperm.slane %v658, 0
        %v674 = vperm.slane %v659, 0
        %v675 = vperm.slane %v660, 0
        %v676 = vperm.slane %v661, 0
        %v677 = vperm.slane %v662, 0
        %v678 = vperm.slane %v663, 0
        %v679 = vperm.slane %v654, 0
        %v680 = vperm.slane %v664, 0
        %v681 = vperm.slane %v665, 0
        %v682 = vperm.slane %v666, 0
        %v683 = vperm.slane %v667, 0
        %v684 = vperm.slane %v668, 0
        %v685 = vperm.slane %v669, 0
        %v686 = vperm.slane %v670, 0
        %v703 = vmul.f32 %v671, %v652
        %v704 = vmul.f32 %v672, %v652
        %v705 = vmul.f32 %v673, %v652
        %v706 = vmul.f32 %v674, %v652
        %v707 = vmul.f32 %v675, %v652
        %v708 = vmul.f32 %v676, %v652
        %v709 = vmul.f32 %v677, %v652
        %v710 = vmul.f32 %v678, %v652
        %v711 = vmul.f32 %v679, %v652
        %v712 = vmul.f32 %v680, %v652
        %v713 = vmul.f32 %v681, %v652
        %v714 = vmul.f32 %v682, %v652
        %v715 = vmul.f32 %v683, %v652
        %v716 = vmul.f32 %v684, %v652
        %v717 = vmul.f32 %v685, %v652
        %v718 = vmul.f32 %v686, %v652
        %v719 = vadd.f32 %v635, %v703
        %v720 = vadd.f32 %v636, %v704
        %v721 = vadd.f32 %v637, %v705
        %v722 = vadd.f32 %v638, %v706
        %v723 = vadd.f32 %v639, %v707
        %v724 = vadd.f32 %v640, %v708
        %v725 = vadd.f32 %v641, %v709
        %v726 = vadd.f32 %v642, %v710
        %v727 = vadd.f32 %v643, %v711
        %v728 = vadd.f32 %v644, %v712
        %v729 = vadd.f32 %v645, %v713
        %v730 = vadd.f32 %v646, %v714
        %v731 = vadd.f32 %v647, %v715
        %v732 = vadd.f32 %v648, %v716
        %v733 = vadd.f32 %v649, %v717
        %v734 = vadd.f32 %v650, %v718
        %s735 = scalar_lea.vmem %s371, 32 [#allocation2]
        %v736 = vld [vmem:[%s735] sm:$0xff]
        %v737 = vld [vmem:[%s378 + $0x40] sm:$0xff]
        %v738 = vld [vmem:[%s378 + $0x48] sm:$0xff]
        %v741 = vrot.slane %v737, 1
        %v742 = vrot.slane %v737, 2
        %v743 = vrot.slane %v737, 3
        %v744 = vrot.slane %v737, 4
        %v745 = vrot.slane %v737, 5
        %v746 = vrot.slane %v737, 6
        %v747 = vrot.slane %v737, 7
        %v748 = vrot.slane %v738, 1
        %v749 = vrot.slane %v738, 2
        %v750 = vrot.slane %v738, 3
        %v751 = vrot.slane %v738, 4
        %v752 = vrot.slane %v738, 5
        %v753 = vrot.slane %v738, 6
        %v754 = vrot.slane %v738, 7
        %v755 = vperm.slane %v737, 0
        %v756 = vperm.slane %v741, 0
        %v757 = vperm.slane %v742, 0
        %v758 = vperm.slane %v743, 0
        %v759 = vperm.slane %v744, 0
        %v760 = vperm.slane %v745, 0
        %v761 = vperm.slane %v746, 0
        %v762 = vperm.slane %v747, 0
        %v763 = vperm.slane %v738, 0
        %v764 = vperm.slane %v748, 0
        %v765 = vperm.slane %v749, 0
        %v766 = vperm.slane %v750, 0
        %v767 = vperm.slane %v751, 0
        %v768 = vperm.slane %v752, 0
        %v769 = vperm.slane %v753, 0
        %v770 = vperm.slane %v754, 0
        %v787 = vmul.f32 %v755, %v736
        %v788 = vmul.f32 %v756, %v736
        %v789 = vmul.f32 %v757, %v736
        %v790 = vmul.f32 %v758, %v736
        %v791 = vmul.f32 %v759, %v736
        %v792 = vmul.f32 %v760, %v736
        %v793 = vmul.f32 %v761, %v736
        %v794 = vmul.f32 %v762, %v736
        %v795 = vmul.f32 %v763, %v736
        %v796 = vmul.f32 %v764, %v736
        %v797 = vmul.f32 %v765, %v736
        %v798 = vmul.f32 %v766, %v736
        %v799 = vmul.f32 %v767, %v736
        %v800 = vmul.f32 %v768, %v736
        %v801 = vmul.f32 %v769, %v736
        %v802 = vmul.f32 %v770, %v736
        %v803 = vadd.f32 %v719, %v787
        %v804 = vadd.f32 %v720, %v788
        %v805 = vadd.f32 %v721, %v789
        %v806 = vadd.f32 %v722, %v790
        %v807 = vadd.f32 %v723, %v791
        %v808 = vadd.f32 %v724, %v792
        %v809 = vadd.f32 %v725, %v793
        %v810 = vadd.f32 %v726, %v794
        %v811 = vadd.f32 %v727, %v795
        %v812 = vadd.f32 %v728, %v796
        %v813 = vadd.f32 %v729, %v797
        %v814 = vadd.f32 %v730, %v798
        %v815 = vadd.f32 %v731, %v799
        %v816 = vadd.f32 %v732, %v800
        %v817 = vadd.f32 %v733, %v801
        %v818 = vadd.f32 %v734, %v802
        %s819 = scalar_lea.vmem %s371, 40 [#allocation2]
        %v820 = vld [vmem:[%s819] sm:$0xff]
        %v821 = vld [vmem:[%s378 + $0x50] sm:$0xff]
        %v822 = vld [vmem:[%s378 + $0x58] sm:$0xff]
        %v825 = vrot.slane %v821, 1
        %v826 = vrot.slane %v821, 2
        %v827 = vrot.slane %v821, 3
        %v828 = vrot.slane %v821, 4
        %v829 = vrot.slane %v821, 5
        %v830 = vrot.slane %v821, 6
        %v831 = vrot.slane %v821, 7
        %v832 = vrot.slane %v822, 1
        %v833 = vrot.slane %v822, 2
        %v834 = vrot.slane %v822, 3
        %v835 = vrot.slane %v822, 4
        %v836 = vrot.slane %v822, 5
        %v837 = vrot.slane %v822, 6
        %v838 = vrot.slane %v822, 7
        %v839 = vperm.slane %v821, 0
        %v840 = vperm.slane %v825, 0
        %v841 = vperm.slane %v826, 0
        %v842 = vperm.slane %v827, 0
        %v843 = vperm.slane %v828, 0
        %v844 = vperm.slane %v829, 0
        %v845 = vperm.slane %v830, 0
        %v846 = vperm.slane %v831, 0
        %v847 = vperm.slane %v822, 0
        %v848 = vperm.slane %v832, 0
        %v849 = vperm.slane %v833, 0
        %v850 = vperm.slane %v834, 0
        %v851 = vperm.slane %v835, 0
        %v852 = vperm.slane %v836, 0
        %v853 = vperm.slane %v837, 0
        %v854 = vperm.slane %v838, 0
        %v871 = vmul.f32 %v839, %v820
        %v872 = vmul.f32 %v840, %v820
        %v873 = vmul.f32 %v841, %v820
        %v874 = vmul.f32 %v842, %v820
        %v875 = vmul.f32 %v843, %v820
        %v876 = vmul.f32 %v844, %v820
        %v877 = vmul.f32 %v845, %v820
        %v878 = vmul.f32 %v846, %v820
        %v879 = vmul.f32 %v847, %v820
        %v880 = vmul.f32 %v848, %v820
        %v881 = vmul.f32 %v849, %v820
        %v882 = vmul.f32 %v850, %v820
        %v883 = vmul.f32 %v851, %v820
        %v884 = vmul.f32 %v852, %v820
        %v885 = vmul.f32 %v853, %v820
        %v886 = vmul.f32 %v854, %v820
        %v887 = vadd.f32 %v803, %v871
        %v888 = vadd.f32 %v804, %v872
        %v889 = vadd.f32 %v805, %v873
        %v890 = vadd.f32 %v806, %v874
        %v891 = vadd.f32 %v807, %v875
        %v892 = vadd.f32 %v808, %v876
        %v893 = vadd.f32 %v809, %v877
        %v894 = vadd.f32 %v810, %v878
        %v895 = vadd.f32 %v811, %v879
        %v896 = vadd.f32 %v812, %v880
        %v897 = vadd.f32 %v813, %v881
        %v898 = vadd.f32 %v814, %v882
        %v899 = vadd.f32 %v815, %v883
        %v900 = vadd.f32 %v816, %v884
        %v901 = vadd.f32 %v817, %v885
        %v902 = vadd.f32 %v818, %v886
        %s903 = scalar_lea.vmem %s371, 48 [#allocation2]
        %v904 = vld [vmem:[%s903] sm:$0xff]
        %v905 = vld [vmem:[%s378 + $0x60] sm:$0xff]
        %v906 = vld [vmem:[%s378 + $0x68] sm:$0xff]
        %v909 = vrot.slane %v905, 1
        %v910 = vrot.slane %v905, 2
        %v911 = vrot.slane %v905, 3
        %v912 = vrot.slane %v905, 4
        %v913 = vrot.slane %v905, 5
        %v914 = vrot.slane %v905, 6
        %v915 = vrot.slane %v905, 7
        %v916 = vrot.slane %v906, 1
        %v917 = vrot.slane %v906, 2
        %v918 = vrot.slane %v906, 3
        %v919 = vrot.slane %v906, 4
        %v920 = vrot.slane %v906, 5
        %v921 = vrot.slane %v906, 6
        %v922 = vrot.slane %v906, 7
        %v923 = vperm.slane %v905, 0
        %v924 = vperm.slane %v909, 0
        %v925 = vperm.slane %v910, 0
        %v926 = vperm.slane %v911, 0
        %v927 = vperm.slane %v912, 0
        %v928 = vperm.slane %v913, 0
        %v929 = vperm.slane %v914, 0
        %v930 = vperm.slane %v915, 0
        %v931 = vperm.slane %v906, 0
        %v932 = vperm.slane %v916, 0
        %v933 = vperm.slane %v917, 0
        %v934 = vperm.slane %v918, 0
        %v935 = vperm.slane %v919, 0
        %v936 = vperm.slane %v920, 0
        %v937 = vperm.slane %v921, 0
        %v938 = vperm.slane %v922, 0
        %v955 = vmul.f32 %v923, %v904
        %v956 = vmul.f32 %v924, %v904
        %v957 = vmul.f32 %v925, %v904
        %v958 = vmul.f32 %v926, %v904
        %v959 = vmul.f32 %v927, %v904
        %v960 = vmul.f32 %v928, %v904
        %v961 = vmul.f32 %v929, %v904
        %v962 = vmul.f32 %v930, %v904
        %v963 = vmul.f32 %v931, %v904
        %v964 = vmul.f32 %v932, %v904
        %v965 = vmul.f32 %v933, %v904
        %v966 = vmul.f32 %v934, %v904
        %v967 = vmul.f32 %v935, %v904
        %v968 = vmul.f32 %v936, %v904
        %v969 = vmul.f32 %v937, %v904
        %v970 = vmul.f32 %v938, %v904
        %v971 = vadd.f32 %v887, %v955
        %v972 = vadd.f32 %v888, %v956
        %v973 = vadd.f32 %v889, %v957
        %v974 = vadd.f32 %v890, %v958
        %v975 = vadd.f32 %v891, %v959
        %v976 = vadd.f32 %v892, %v960
        %v977 = vadd.f32 %v893, %v961
        %v978 = vadd.f32 %v894, %v962
        %v979 = vadd.f32 %v895, %v963
        %v980 = vadd.f32 %v896, %v964
        %v981 = vadd.f32 %v897, %v965
        %v982 = vadd.f32 %v898, %v966
        %v983 = vadd.f32 %v899, %v967
        %v984 = vadd.f32 %v900, %v968
        %v985 = vadd.f32 %v901, %v969
        %v986 = vadd.f32 %v902, %v970
        %s987 = scalar_lea.vmem %s371, 56 [#allocation2]
        %v988 = vld [vmem:[%s987] sm:$0xff]
        %v989 = vld [vmem:[%s378 + $0x70] sm:$0xff]
        %v990 = vld [vmem:[%s378 + $0x78] sm:$0xff]
        %v993 = vrot.slane %v989, 1
        %v994 = vrot.slane %v989, 2
        %v995 = vrot.slane %v989, 3
        %v996 = vrot.slane %v989, 4
        %v997 = vrot.slane %v989, 5
        %v998 = vrot.slane %v989, 6
        %v999 = vrot.slane %v989, 7
        %v1000 = vrot.slane %v990, 1
        %v1001 = vrot.slane %v990, 2
        %v1002 = vrot.slane %v990, 3
        %v1003 = vrot.slane %v990, 4
        %v1004 = vrot.slane %v990, 5
        %v1005 = vrot.slane %v990, 6
        %v1006 = vrot.slane %v990, 7
        %v1007 = vperm.slane %v989, 0
        %v1008 = vperm.slane %v993, 0
        %v1009 = vperm.slane %v994, 0
        %v1010 = vperm.slane %v995, 0
        %v1011 = vperm.slane %v996, 0
        %v1012 = vperm.slane %v997, 0
        %v1013 = vperm.slane %v998, 0
        %v1014 = vperm.slane %v999, 0
        %v1015 = vperm.slane %v990, 0
        %v1016 = vperm.slane %v1000, 0
        %v1017 = vperm.slane %v1001, 0
        %v1018 = vperm.slane %v1002, 0
        %v1019 = vperm.slane %v1003, 0
        %v1020 = vperm.slane %v1004, 0
        %v1021 = vperm.slane %v1005, 0
        %v1022 = vperm.slane %v1006, 0
        %v1039 = vmul.f32 %v1007, %v988
        %v1040 = vmul.f32 %v1008, %v988
        %v1041 = vmul.f32 %v1009, %v988
        %v1042 = vmul.f32 %v1010, %v988
        %v1043 = vmul.f32 %v1011, %v988
        %v1044 = vmul.f32 %v1012, %v988
        %v1045 = vmul.f32 %v1013, %v988
        %v1046 = vmul.f32 %v1014, %v988
        %v1047 = vmul.f32 %v1015, %v988
        %v1048 = vmul.f32 %v1016, %v988
        %v1049 = vmul.f32 %v1017, %v988
        %v1050 = vmul.f32 %v1018, %v988
        %v1051 = vmul.f32 %v1019, %v988
        %v1052 = vmul.f32 %v1020, %v988
        %v1053 = vmul.f32 %v1021, %v988
        %v1054 = vmul.f32 %v1022, %v988
        %v1055 = vadd.f32 %v971, %v1039
        %v1056 = vadd.f32 %v972, %v1040
        %v1057 = vadd.f32 %v973, %v1041
        %v1058 = vadd.f32 %v974, %v1042
        %v1059 = vadd.f32 %v975, %v1043
        %v1060 = vadd.f32 %v976, %v1044
        %v1061 = vadd.f32 %v977, %v1045
        %v1062 = vadd.f32 %v978, %v1046
        %v1063 = vadd.f32 %v979, %v1047
        %v1064 = vadd.f32 %v980, %v1048
        %v1065 = vadd.f32 %v981, %v1049
        %v1066 = vadd.f32 %v982, %v1050
        %v1067 = vadd.f32 %v983, %v1051
        %v1068 = vadd.f32 %v984, %v1052
        %v1069 = vadd.f32 %v985, %v1053
        %v1070 = vadd.f32 %v986, %v1054
        %v1071 = vld [vmem:[%s378 + $0x80] sm:$0xff]
        %v1072 = vld [vmem:[%s378 + $0x88] sm:$0xff]
        %v1075 = vrot.slane %v1071, 1
        %v1076 = vrot.slane %v1071, 2
        %v1077 = vrot.slane %v1071, 3
        %v1078 = vrot.slane %v1071, 4
        %v1079 = vrot.slane %v1071, 5
        %v1080 = vrot.slane %v1071, 6
        %v1081 = vrot.slane %v1071, 7
        %v1082 = vrot.slane %v1072, 1
        %v1083 = vrot.slane %v1072, 2
        %v1084 = vrot.slane %v1072, 3
        %v1085 = vrot.slane %v1072, 4
        %v1086 = vrot.slane %v1072, 5
        %v1087 = vrot.slane %v1072, 6
        %v1088 = vrot.slane %v1072, 7
        %v1089 = vperm.slane %v1071, 0
        %v1090 = vperm.slane %v1075, 0
        %v1091 = vperm.slane %v1076, 0
        %v1092 = vperm.slane %v1077, 0
        %v1093 = vperm.slane %v1078, 0
        %v1094 = vperm.slane %v1079, 0
        %v1095 = vperm.slane %v1080, 0
        %v1096 = vperm.slane %v1081, 0
        %v1097 = vperm.slane %v1072, 0
        %v1098 = vperm.slane %v1082, 0
        %v1099 = vperm.slane %v1083, 0
        %v1100 = vperm.slane %v1084, 0
        %v1101 = vperm.slane %v1085, 0
        %v1102 = vperm.slane %v1086, 0
        %v1103 = vperm.slane %v1087, 0
        %v1104 = vperm.slane %v1088, 0
        %v1121 = vadd.f32 %v1055, %v1089
        %v1122 = vadd.f32 %v1056, %v1090
        %v1123 = vadd.f32 %v1057, %v1091
        %v1124 = vadd.f32 %v1058, %v1092
        %v1125 = vadd.f32 %v1059, %v1093
        %v1126 = vadd.f32 %v1060, %v1094
        %v1127 = vadd.f32 %v1061, %v1095
        %v1128 = vadd.f32 %v1062, %v1096
        %v1129 = vadd.f32 %v1063, %v1097
        %v1130 = vadd.f32 %v1064, %v1098
        %v1131 = vadd.f32 %v1065, %v1099
        %v1132 = vadd.f32 %v1066, %v1100
        %v1133 = vadd.f32 %v1067, %v1101
        %v1134 = vadd.f32 %v1068, %v1102
        %v1135 = vadd.f32 %v1069, %v1103
        %v1136 = vadd.f32 %v1070, %v1104
        %v1137 = vmax.f32 %v1121, 0.0
        %v1138 = vmax.f32 %v1122, 0.0
        %v1139 = vmax.f32 %v1123, 0.0
        %v1140 = vmax.f32 %v1124, 0.0
        %v1141 = vmax.f32 %v1125, 0.0
        %v1142 = vmax.f32 %v1126, 0.0
        %v1143 = vmax.f32 %v1127, 0.0
        %v1144 = vmax.f32 %v1128, 0.0
        %v1145 = vmax.f32 %v1129, 0.0
        %v1146 = vmax.f32 %v1130, 0.0
        %v1147 = vmax.f32 %v1131, 0.0
        %v1148 = vmax.f32 %v1132, 0.0
        %v1149 = vmax.f32 %v1133, 0.0
        %v1150 = vmax.f32 %v1134, 0.0
        %v1151 = vmax.f32 %v1135, 0.0
        %v1152 = vmax.f32 %v1136, 0.0
        %v1153 = vld [vmem:[%s378 + $0x90] sm:$0xf]
        %v1155 = vrot.slane %v1153, 1
        %v1156 = vrot.slane %v1153, 2
        %v1157 = vrot.slane %v1153, 3
        %v1158 = vperm.slane %v1153, 0
        %v1159 = vperm.slane %v1155, 0
        %v1160 = vperm.slane %v1156, 0
        %v1161 = vperm.slane %v1157, 0
        %v1166 = vmul.f32 %v1158, %v1137
        %v1167 = vmul.f32 %v1159, %v1137
        %v1168 = vmul.f32 %v1160, %v1137
        %v1169 = vmul.f32 %v1161, %v1137
        %v1170 = vadd.f32 %v1166, 0.0
        %v1171 = vadd.f32 %v1167, 0.0
        %v1172 = vadd.f32 %v1168, 0.0
        %v1173 = vadd.f32 %v1169, 0.0
        %v1174 = vld [vmem:[%s378 + $0x98] sm:$0xf]
        %v1176 = vrot.slane %v1174, 1
        %v1177 = vrot.slane %v1174, 2
        %v1178 = vrot.slane %v1174, 3
        %v1179 = vperm.slane %v1174, 0
        %v1180 = vperm.slane %v1176, 0
        %v1181 = vperm.slane %v1177, 0
        %v1182 = vperm.slane %v1178, 0
        %v1187 = vmul.f32 %v1179, %v1138
        %v1188 = vmul.f32 %v1180, %v1138
        %v1189 = vmul.f32 %v1181, %v1138
        %v1190 = vmul.f32 %v1182, %v1138
        %v1191 = vadd.f32 %v1170, %v1187
        %v1192 = vadd.f32 %v1171, %v1188
        %v1193 = vadd.f32 %v1172, %v1189
        %v1194 = vadd.f32 %v1173, %v1190
        %v1195 = vld [vmem:[%s378 + $0xa0] sm:$0xf]
        %v1197 = vrot.slane %v1195, 1
        %v1198 = vrot.slane %v1195, 2
        %v1199 = vrot.slane %v1195, 3
        %v1200 = vperm.slane %v1195, 0
        %v1201 = vperm.slane %v1197, 0
        %v1202 = vperm.slane %v1198, 0
        %v1203 = vperm.slane %v1199, 0
        %v1208 = vmul.f32 %v1200, %v1139
        %v1209 = vmul.f32 %v1201, %v1139
        %v1210 = vmul.f32 %v1202, %v1139
        %v1211 = vmul.f32 %v1203, %v1139
        %v1212 = vadd.f32 %v1191, %v1208
        %v1213 = vadd.f32 %v1192, %v1209
        %v1214 = vadd.f32 %v1193, %v1210
        %v1215 = vadd.f32 %v1194, %v1211
        %v1216 = vld [vmem:[%s378 + $0xa8] sm:$0xf]
        %v1218 = vrot.slane %v1216, 1
        %v1219 = vrot.slane %v1216, 2
        %v1220 = vrot.slane %v1216, 3
        %v1221 = vperm.slane %v1216, 0
        %v1222 = vperm.slane %v1218, 0
        %v1223 = vperm.slane %v1219, 0
        %v1224 = vperm.slane %v1220, 0
        %v1229 = vmul.f32 %v1221, %v1140
        %v1230 = vmul.f32 %v1222, %v1140
        %v1231 = vmul.f32 %v1223, %v1140
        %v1232 = vmul.f32 %v1224, %v1140
        %v1233 = vadd.f32 %v1212, %v1229
        %v1234 = vadd.f32 %v1213, %v1230
        %v1235 = vadd.f32 %v1214, %v1231
        %v1236 = vadd.f32 %v1215, %v1232
        %v1237 = vld [vmem:[%s378 + $0xb0] sm:$0xf]
        %v1239 = vrot.slane %v1237, 1
        %v1240 = vrot.slane %v1237, 2
        %v1241 = vrot.slane %v1237, 3
        %v1242 = vperm.slane %v1237, 0
        %v1243 = vperm.slane %v1239, 0
        %v1244 = vperm.slane %v1240, 0
        %v1245 = vperm.slane %v1241, 0
        %v1250 = vmul.f32 %v1242, %v1141
        %v1251 = vmul.f32 %v1243, %v1141
        %v1252 = vmul.f32 %v1244, %v1141
        %v1253 = vmul.f32 %v1245, %v1141
        %v1254 = vadd.f32 %v1233, %v1250
        %v1255 = vadd.f32 %v1234, %v1251
        %v1256 = vadd.f32 %v1235, %v1252
        %v1257 = vadd.f32 %v1236, %v1253
        %v1258 = vld [vmem:[%s378 + $0xb8] sm:$0xf]
        %v1260 = vrot.slane %v1258, 1
        %v1261 = vrot.slane %v1258, 2
        %v1262 = vrot.slane %v1258, 3
        %v1263 = vperm.slane %v1258, 0
        %v1264 = vperm.slane %v1260, 0
        %v1265 = vperm.slane %v1261, 0
        %v1266 = vperm.slane %v1262, 0
        %v1271 = vmul.f32 %v1263, %v1142
        %v1272 = vmul.f32 %v1264, %v1142
        %v1273 = vmul.f32 %v1265, %v1142
        %v1274 = vmul.f32 %v1266, %v1142
        %v1275 = vadd.f32 %v1254, %v1271
        %v1276 = vadd.f32 %v1255, %v1272
        %v1277 = vadd.f32 %v1256, %v1273
        %v1278 = vadd.f32 %v1257, %v1274
        %v1279 = vld [vmem:[%s378 + $0xc0] sm:$0xf]
        %v1281 = vrot.slane %v1279, 1
        %v1282 = vrot.slane %v1279, 2
        %v1283 = vrot.slane %v1279, 3
        %v1284 = vperm.slane %v1279, 0
        %v1285 = vperm.slane %v1281, 0
        %v1286 = vperm.slane %v1282, 0
        %v1287 = vperm.slane %v1283, 0
        %v1292 = vmul.f32 %v1284, %v1143
        %v1293 = vmul.f32 %v1285, %v1143
        %v1294 = vmul.f32 %v1286, %v1143
        %v1295 = vmul.f32 %v1287, %v1143
        %v1296 = vadd.f32 %v1275, %v1292
        %v1297 = vadd.f32 %v1276, %v1293
        %v1298 = vadd.f32 %v1277, %v1294
        %v1299 = vadd.f32 %v1278, %v1295
        %v1300 = vld [vmem:[%s378 + $0xc8] sm:$0xf]
        %v1302 = vrot.slane %v1300, 1
        %v1303 = vrot.slane %v1300, 2
        %v1304 = vrot.slane %v1300, 3
        %v1305 = vperm.slane %v1300, 0
        %v1306 = vperm.slane %v1302, 0
        %v1307 = vperm.slane %v1303, 0
        %v1308 = vperm.slane %v1304, 0
        %v1313 = vmul.f32 %v1305, %v1144
        %v1314 = vmul.f32 %v1306, %v1144
        %v1315 = vmul.f32 %v1307, %v1144
        %v1316 = vmul.f32 %v1308, %v1144
        %v1317 = vadd.f32 %v1296, %v1313
        %v1318 = vadd.f32 %v1297, %v1314
        %v1319 = vadd.f32 %v1298, %v1315
        %v1320 = vadd.f32 %v1299, %v1316
        %v1321 = vld [vmem:[%s378 + $0xd0] sm:$0xf]
        %v1323 = vrot.slane %v1321, 1
        %v1324 = vrot.slane %v1321, 2
        %v1325 = vrot.slane %v1321, 3
        %v1326 = vperm.slane %v1321, 0
        %v1327 = vperm.slane %v1323, 0
        %v1328 = vperm.slane %v1324, 0
        %v1329 = vperm.slane %v1325, 0
        %v1334 = vmul.f32 %v1326, %v1145
        %v1335 = vmul.f32 %v1327, %v1145
        %v1336 = vmul.f32 %v1328, %v1145
        %v1337 = vmul.f32 %v1329, %v1145
        %v1338 = vadd.f32 %v1317, %v1334
        %v1339 = vadd.f32 %v1318, %v1335
        %v1340 = vadd.f32 %v1319, %v1336
        %v1341 = vadd.f32 %v1320, %v1337
        %v1342 = vld [vmem:[%s378 + $0xd8] sm:$0xf]
        %v1344 = vrot.slane %v1342, 1
        %v1345 = vrot.slane %v1342, 2
        %v1346 = vrot.slane %v1342, 3
        %v1347 = vperm.slane %v1342, 0
        %v1348 = vperm.slane %v1344, 0
        %v1349 = vperm.slane %v1345, 0
        %v1350 = vperm.slane %v1346, 0
        %v1355 = vmul.f32 %v1347, %v1146
        %v1356 = vmul.f32 %v1348, %v1146
        %v1357 = vmul.f32 %v1349, %v1146
        %v1358 = vmul.f32 %v1350, %v1146
        %v1359 = vadd.f32 %v1338, %v1355
        %v1360 = vadd.f32 %v1339, %v1356
        %v1361 = vadd.f32 %v1340, %v1357
        %v1362 = vadd.f32 %v1341, %v1358
        %v1363 = vld [vmem:[%s378 + $0xe0] sm:$0xf]
        %v1365 = vrot.slane %v1363, 1
        %v1366 = vrot.slane %v1363, 2
        %v1367 = vrot.slane %v1363, 3
        %v1368 = vperm.slane %v1363, 0
        %v1369 = vperm.slane %v1365, 0
        %v1370 = vperm.slane %v1366, 0
        %v1371 = vperm.slane %v1367, 0
        %v1376 = vmul.f32 %v1368, %v1147
        %v1377 = vmul.f32 %v1369, %v1147
        %v1378 = vmul.f32 %v1370, %v1147
        %v1379 = vmul.f32 %v1371, %v1147
        %v1380 = vadd.f32 %v1359, %v1376
        %v1381 = vadd.f32 %v1360, %v1377
        %v1382 = vadd.f32 %v1361, %v1378
        %v1383 = vadd.f32 %v1362, %v1379
        %v1384 = vld [vmem:[%s378 + $0xe8] sm:$0xf]
        %v1386 = vrot.slane %v1384, 1
        %v1387 = vrot.slane %v1384, 2
        %v1388 = vrot.slane %v1384, 3
        %v1389 = vperm.slane %v1384, 0
        %v1390 = vperm.slane %v1386, 0
        %v1391 = vperm.slane %v1387, 0
        %v1392 = vperm.slane %v1388, 0
        %v1397 = vmul.f32 %v1389, %v1148
        %v1398 = vmul.f32 %v1390, %v1148
        %v1399 = vmul.f32 %v1391, %v1148
        %v1400 = vmul.f32 %v1392, %v1148
        %v1401 = vadd.f32 %v1380, %v1397
        %v1402 = vadd.f32 %v1381, %v1398
        %v1403 = vadd.f32 %v1382, %v1399
        %v1404 = vadd.f32 %v1383, %v1400
        %v1405 = vld [vmem:[%s378 + $0xf0] sm:$0xf]
        %v1407 = vrot.slane %v1405, 1
        %v1408 = vrot.slane %v1405, 2
        %v1409 = vrot.slane %v1405, 3
        %v1410 = vperm.slane %v1405, 0
        %v1411 = vperm.slane %v1407, 0
        %v1412 = vperm.slane %v1408, 0
        %v1413 = vperm.slane %v1409, 0
        %v1418 = vmul.f32 %v1410, %v1149
        %v1419 = vmul.f32 %v1411, %v1149
        %v1420 = vmul.f32 %v1412, %v1149
        %v1421 = vmul.f32 %v1413, %v1149
        %v1422 = vadd.f32 %v1401, %v1418
        %v1423 = vadd.f32 %v1402, %v1419
        %v1424 = vadd.f32 %v1403, %v1420
        %v1425 = vadd.f32 %v1404, %v1421
        %v1426 = vld [vmem:[%s378 + $0xf8] sm:$0xf]
        %v1428 = vrot.slane %v1426, 1
        %v1429 = vrot.slane %v1426, 2
        %v1430 = vrot.slane %v1426, 3
        %v1431 = vperm.slane %v1426, 0
        %v1432 = vperm.slane %v1428, 0
        %v1433 = vperm.slane %v1429, 0
        %v1434 = vperm.slane %v1430, 0
        %v1439 = vmul.f32 %v1431, %v1150
        %v1440 = vmul.f32 %v1432, %v1150
        %v1441 = vmul.f32 %v1433, %v1150
        %v1442 = vmul.f32 %v1434, %v1150
        %v1443 = vadd.f32 %v1422, %v1439
        %v1444 = vadd.f32 %v1423, %v1440
        %v1445 = vadd.f32 %v1424, %v1441
        %v1446 = vadd.f32 %v1425, %v1442
        %v1447 = vld [vmem:[%s378 + $0x100] sm:$0xf]
        %v1449 = vrot.slane %v1447, 1
        %v1450 = vrot.slane %v1447, 2
        %v1451 = vrot.slane %v1447, 3
        %v1452 = vperm.slane %v1447, 0
        %v1453 = vperm.slane %v1449, 0
        %v1454 = vperm.slane %v1450, 0
        %v1455 = vperm.slane %v1451, 0
        %v1460 = vmul.f32 %v1452, %v1151
        %v1461 = vmul.f32 %v1453, %v1151
        %v1462 = vmul.f32 %v1454, %v1151
        %v1463 = vmul.f32 %v1455, %v1151
        %v1464 = vadd.f32 %v1443, %v1460
        %v1465 = vadd.f32 %v1444, %v1461
        %v1466 = vadd.f32 %v1445, %v1462
        %v1467 = vadd.f32 %v1446, %v1463
        %v1468 = vld [vmem:[%s378 + $0x108] sm:$0xf]
        %v1470 = vrot.slane %v1468, 1
        %v1471 = vrot.slane %v1468, 2
        %v1472 = vrot.slane %v1468, 3
        %v1473 = vperm.slane %v1468, 0
        %v1474 = vperm.slane %v1470, 0
        %v1475 = vperm.slane %v1471, 0
        %v1476 = vperm.slane %v1472, 0
        %v1481 = vmul.f32 %v1473, %v1152
        %v1482 = vmul.f32 %v1474, %v1152
        %v1483 = vmul.f32 %v1475, %v1152
        %v1484 = vmul.f32 %v1476, %v1152
        %v1485 = vadd.f32 %v1464, %v1481
        %v1486 = vadd.f32 %v1465, %v1482
        %v1487 = vadd.f32 %v1466, %v1483
        %v1488 = vadd.f32 %v1467, %v1484
        %v1489 = vld [vmem:[%s378 + $0x110] sm:$0xf]
        %v1491 = vrot.slane %v1489, 1
        %v1492 = vrot.slane %v1489, 2
        %v1493 = vrot.slane %v1489, 3
        %v1494 = vperm.slane %v1489, 0
        %v1495 = vperm.slane %v1491, 0
        %v1496 = vperm.slane %v1492, 0
        %v1497 = vperm.slane %v1493, 0
        %v1502 = vadd.f32 %v1485, %v1494
        %v1503 = vadd.f32 %v1486, %v1495
        %v1504 = vadd.f32 %v1487, %v1496
        %v1505 = vadd.f32 %v1488, %v1497
        %v1506 = vld [vmem:[%s378 + $0x118] sm:$0xff]
        %v1507 = vmul.f32 %v1502, %v1506
        %v1508 = vmul.f32 %v1503, %v1506
        %v1509 = vmul.f32 %v1504, %v1506
        %v1510 = vmul.f32 %v1505, %v1506
        %v1515 = vrot.slane %v1507, 2
        %v1516 = vrot.slane %v1508, 2
        %v1517 = vrot.slane %v1509, 2
        %v1518 = vrot.slane %v1510, 2
        %v1523 = vadd.f32 %v1507, %v1515
        %v1524 = vadd.f32 %v1508, %v1516
        %v1525 = vadd.f32 %v1509, %v1517
        %v1526 = vadd.f32 %v1510, %v1518
        %v1527 = vrot.slane %v1507, 4
        %v1528 = vrot.slane %v1508, 4
        %v1529 = vrot.slane %v1509, 4
        %v1530 = vrot.slane %v1510, 4
        %v1535 = vadd.f32 %v1523, %v1527
        %v1536 = vadd.f32 %v1524, %v1528
        %v1537 = vadd.f32 %v1525, %v1529
        %v1538 = vadd.f32 %v1526, %v1530
        %v1539 = vrot.slane %v1507, 6
        %v1540 = vrot.slane %v1508, 6
        %v1541 = vrot.slane %v1509, 6
        %v1542 = vrot.slane %v1510, 6
        %v1547 = vadd.f32 %v1535, %v1539
        %v1548 = vadd.f32 %v1536, %v1540
        %v1549 = vadd.f32 %v1537, %v1541
        %v1550 = vadd.f32 %v1538, %v1542
        %v1551 = vld [vmem:[%s378 + $0x120] sm:$0x1]
        %v1552 = vperm.slane %v1551, 0
        %v1553 = vadd.f32 %v1547, %v1552
        %v1554 = vadd.f32 %v1548, %v1552
        %v1555 = vadd.f32 %v1549, %v1552
        %v1556 = vadd.f32 %v1550, %v1552
        %v1557 = vmax.f32 %v1553, 0.0
        %v1558 = vmax.f32 %v1554, 0.0
        %v1559 = vmax.f32 %v1555, 0.0
        %v1560 = vmax.f32 %v1556, 0.0
        %1561 = vst [vmem:[%s399] sm:$0x3] %v1557
        %1562 = vst [vmem:[%s399 + $0x2] sm:$0x3] %v1558
        %1563 = vst [vmem:[%s399 + $0x4] sm:$0x3] %v1559
        %1564 = vst [vmem:[%s399 + $0x6] sm:$0x3] %v1560
        %s1565 = sand.u32 %s73, 1
        %s1566 = sand.u32 %s73, 1
        %s1567 = smul.addr %s1566, 8
        %s1568 = scalar_lea.vmem [#allocation4], %s1567
        // Predicated region
        $region105: #{local_linear_forward.1} parent=95 // pred_check
          %p1569 = pneg %p83
        $region106: #{local_linear_forward.1} parent=95 // pred_check_branch
          %1571 = sbr.rel (%p1569) target = $region108
        $region107: #{local_linear_forward.1} parent=95 // pred_region
          %s1572 = smul.addr %s13, 2
          %s1573 = scalar_lea.vmem %s2, %s1572
          // Predicated region
          $region109: #{local_linear_forward.1} parent=107 // pred_check
            _
          $region110: #{local_linear_forward.1} parent=107 // pred_check_branch
            %1575 = sbr.rel (0) target = $region112
          $region111: #{local_linear_forward.1} parent=107 // pred_region
            // Predicated region
            $region113: #{local_linear_forward.1} parent=111 // pred_check
              _
            $region114: #{local_linear_forward.1} parent=111 // pred_check_branch
              %1577 = sbr.rel target = $region116
            $region115: #{local_linear_forward.1} parent=111 // pred_region
              // Predicated region
              $region128: #{local_linear_forward.1} parent=115 // pred_check
                _
              $region129: #{local_linear_forward.1} parent=115 // pred_check_branch
                %1599 = sbr.rel (0) target = $region131
              $region130: #{local_linear_forward.1} parent=115 // pred_region
                loop: start=0, step=1, limit=1
                $region132: #{local_linear_forward.1} parent=130 // loop_pre_header
                  _
                $region133: #{local_linear_forward.1} parent=130 // loop_header
                  %s1601 = sphi 0, %s1605
                  %p1602 = scmp.ge.s32.totalorder %s1601, 1
                  %s1606 = sphi %s1568, %s1568
                  %s1607 = sphi %s1573, %s1573
                $region134: #{local_linear_forward.1} parent=130 // loop_header_branch
                  %1604 = sbr.rel (%p1602) target = $region138
                $region135: #{local_linear_forward.1} parent=130 // loop_body
                  _
                $region136: #{local_linear_forward.1} parent=130 // loop_footer
                  %s1605 = sadd.s32 1, %s1601
                $region137: #{local_linear_forward.1} parent=130 // loop_footer_branch
                  %1600 = sbr.rel target = $region133
                $region138: #{local_linear_forward.1} parent=130 // loop_exit
                  _
                %s1609 = ssub.s32 4, 1
                loop: start=0, step=1, limit=1
                $region139: #{local_linear_forward.1} parent=130 // loop_pre_header
                  _
                $region140: #{local_linear_forward.1} parent=130 // loop_header
                  %s1611 = sphi 0, %s1615
                  %p1612 = scmp.ge.s32.totalorder %s1611, 1
                  %s1616 = sphi %s1568, %s1568
                  %s1617 = sphi %s1573, %s1573
                $region141: #{local_linear_forward.1} parent=130 // loop_header_branch
                  %1614 = sbr.rel (%p1612) target = $region145
                $region142: #{local_linear_forward.1} parent=130 // loop_body
                  %v1618 = vld [vmem:[%s1616] sm:%s1609]
                  %1619 = vst [vmem:[%s1617] sm:%s1609] %v1618
                  %v1620 = vld [vmem:[%s1616 + $0x2] sm:%s1609]
                  %1621 = vst [vmem:[%s1617 + $0x4] sm:%s1609] %v1620
                  %v1622 = vld [vmem:[%s1616 + $0x4] sm:%s1609]
                  %1623 = vst [vmem:[%s1617 + $0x8] sm:%s1609] %v1622
                  %v1624 = vld [vmem:[%s1616 + $0x6] sm:%s1609]
                  %1625 = vst [vmem:[%s1617 + $0xc] sm:%s1609] %v1624
                $region143: #{local_linear_forward.1} parent=130 // loop_footer
                  %s1615 = sadd.s32 1, %s1611
                $region144: #{local_linear_forward.1} parent=130 // loop_footer_branch
                  %1610 = sbr.rel target = $region140
                $region145: #{local_linear_forward.1} parent=130 // loop_exit
                  _
              $region131: #{local_linear_forward.1} parent=115 // pred_fallthru
                _
            $region116: #{local_linear_forward.1} parent=111 // pred_fallthru
              _
            // Predicated region
            $region117: #{local_linear_forward.1} parent=111 // pred_check
              _
            $region118: #{local_linear_forward.1} parent=111 // pred_check_branch
              %1579 = sbr.rel (0) target = $region120
            $region119: #{local_linear_forward.1} parent=111 // pred_region
              %s1581 = ssub.s32 4, 1
              loop: start=0, step=1, limit=1
              $region121: #{local_linear_forward.1} parent=119 // loop_pre_header
                _
              $region122: #{local_linear_forward.1} parent=119 // loop_header
                %s1583 = sphi 0, %s1587
                %p1584 = scmp.ge.s32.totalorder %s1583, 1
                %s1588 = sphi %s1568, %s1568
                %s1589 = sphi %s1573, %s1573
              $region123: #{local_linear_forward.1} parent=119 // loop_header_branch
                %1586 = sbr.rel (%p1584) target = $region127
              $region124: #{local_linear_forward.1} parent=119 // loop_body
                %v1590 = vld [vmem:[%s1588] sm:%s1581]
                %1591 = vst [vmem:[%s1589] sm:%s1581] %v1590
                %v1592 = vld [vmem:[%s1588 + $0x2] sm:%s1581]
                %1593 = vst [vmem:[%s1589 + $0x4] sm:%s1581] %v1592
                %v1594 = vld [vmem:[%s1588 + $0x4] sm:%s1581]
                %1595 = vst [vmem:[%s1589 + $0x8] sm:%s1581] %v1594
                %v1596 = vld [vmem:[%s1588 + $0x6] sm:%s1581]
                %1597 = vst [vmem:[%s1589 + $0xc] sm:%s1581] %v1596
              $region125: #{local_linear_forward.1} parent=119 // loop_footer
                %s1587 = sadd.s32 1, %s1583
              $region126: #{local_linear_forward.1} parent=119 // loop_footer_branch
                %1582 = sbr.rel target = $region122
              $region127: #{local_linear_forward.1} parent=119 // loop_exit
                _
            $region120: #{local_linear_forward.1} parent=111 // pred_fallthru
              _
          $region112: #{local_linear_forward.1} parent=107 // pred_fallthru
            _
          %1626 = vnop
        $region108: #{local_linear_forward.1} parent=95 // pred_fallthru
          _
      $region96: #{local_linear_forward.1} parent=5 // pred_fallthru
        _
      %p1627 = scmp.le.s32.totalorder 2, %s8
      // Predicated region
      $region146: #{local_linear_forward.1} parent=5 // pred_check
        %p1628 = pneg %p1627
      $region147: #{local_linear_forward.1} parent=5 // pred_check_branch
        %1630 = sbr.rel (%p1628) target = $region149
      $region148: #{local_linear_forward.1} parent=5 // pred_region
        %s1631 = ssub.s32 %s8, 2
        // Predicated region
        $region150: #{local_linear_forward.1} parent=148 // pred_check
          %p1632 = pneg %p89
        $region151: #{local_linear_forward.1} parent=148 // pred_check_branch
          %1634 = sbr.rel (%p1632) target = $region153
        $region152: #{local_linear_forward.1} parent=148 // pred_region
          %s1635 = sand.u32 %s74, 1
          %s1636 = sand.u32 %s74, 1
          %s1637 = smul.addr %s1636, 8
          %s1638 = scalar_lea.vmem [#allocation4], %s1637
        $region153: #{local_linear_forward.1} parent=148 // pred_fallthru
          _
      $region149: #{local_linear_forward.1} parent=5 // pred_fallthru
        _
    $region6: #{local_linear_forward.1} parent=1 // loop_footer
      %s12 = sadd.s32 1, %s8
    $region7: #{local_linear_forward.1} parent=1 // loop_footer_branch
      %7 = sbr.rel target = $region3
    $region8: #{local_linear_forward.1} parent=1 // loop_exit
      _

</llo_original>
